<compile_context>
chip_gen: v5e
topology: v5e:2x2
jax: 0.10.0
libtpu: 0.0.40
codegen_flags: <defaults>
</compile_context>

<pallas_src>
import functools

import jax
import jax.numpy as jnp
from jax.experimental import pallas as pl
from jax.experimental.pallas import tpu as pltpu

EPS = 1e-5          # nn.InstanceNorm2d default eps
NEG_SLOPE = 0.01    # LeakyReLU negative_slope


# --------------------------------------------------------------------------
# Fused kernel: transp-conv (k=2,s=2) + 2x [conv3x3(p=1) + InstanceNorm + LeakyReLU]
# NB batch samples per grid step; packed layout (rows, width*channels).
# --------------------------------------------------------------------------
def _up_block_kernel(x_ref, wup_ref, w1_ref, g1_ref, b1_ref,
                     w2_ref, g2_ref, b2_ref, red_ref, redt_ref,
                     o_ref, pbuf, *, NB, H, W, Cin, Cout):
    H2, W2 = 2 * H, 2 * W
    C = Cout
    LP = W2 * C                       # packed lane width (2W*Cout)
    inv_hw = 1.0 / float(H2 * W2)

    # Zero ONLY the two row-padding rows per sample.  Do NOT gate on program_id:
    # with "parallel" the grid may be split across TensorCores (each has its own
    # scratch).  Two tiny stores per step.
    zrow = jnp.zeros((NB, 1, LP), jnp.float32)
    pbuf[:, 0:1, :] = zrow
    pbuf[:, H2 + 1:H2 + 2, :] = zrow

    # ---- transposed conv (k=2, s=2, no bias): single bf16 matmul, N = 2*LP ----
    xp = x_ref[...].reshape(NB * H, W * Cin)                               # bf16
    u = jnp.dot(xp, wup_ref[...], preferred_element_type=jnp.float32)     # (NB*H, 2*LP)
    u0 = u[:, :LP].reshape(NB, H, LP)          # even output rows (dy = 0)
    u1 = u[:, LP:].reshape(NB, H, LP)          # odd output rows  (dy = 1)
    up = jnp.stack([u0, u1], axis=2).reshape(NB, H2, LP)                   # interleave
    pbuf[:, 1:1 + H2, :] = up                  # interior rows, lane offset 0

    def conv3x3_in_lrelu(w_ref, g_ref, b_ref):
        # 3x3 "same" conv: dx folded into block-tridiagonal weights -> 3 matmuls
        # (one per dy) over unshifted lane-aligned row windows; the zero border
        # rows of pbuf provide the vertical padding, the tridiagonal weight
        # structure provides the horizontal padding.
        acc = jnp.zeros((NB * H2, LP), jnp.float32)
        for dy in range(3):
            win = pbuf[:, dy:dy + H2, :].reshape(NB * H2, LP).astype(jnp.bfloat16)
            acc = acc + jnp.dot(win, w_ref[dy], preferred_element_type=jnp.float32)
        acc3 = acc.reshape(NB, H2, LP)

        # per-sample instance-norm stats (single pass), stats matmuls fused 4->2
        rsum = jnp.sum(acc3, axis=1)                                        # (NB, LP)
        rsq = jnp.sum(acc3 * acc3, axis=1)                                  # (NB, LP)
        stats = jnp.dot(jnp.concatenate([rsum, rsq], axis=0), red_ref[...],
                        preferred_element_type=jnp.float32)                 # (2NB, C)
        mean = stats[:NB] * inv_hw
        var = stats[NB:] * inv_hw - mean * mean                             # biased
        inv_std = jax.lax.rsqrt(var + EPS)
        scale_c = g_ref[...] * inv_std                                      # (NB, C)
        shift_c = b_ref[...] - mean * scale_c                               # (NB, C)
        sp = jnp.dot(jnp.concatenate([scale_c, shift_c], axis=0), redt_ref[...],
                     preferred_element_type=jnp.float32)                    # (2NB, LP)
        y = acc3 * sp[:NB][:, None, :] + sp[NB:][:, None, :]
        return jnp.where(y >= 0, y, NEG_SLOPE * y)                          # LeakyReLU

    y1 = conv3x3_in_lrelu(w1_ref, g1_ref, b1_ref)
    pbuf[:, 1:1 + H2, :] = y1         # border rows stay zero -> padding for conv2
    y2 = conv3x3_in_lrelu(w2_ref, g2_ref, b2_ref)
    o_ref[...] = y2                   # lane-dense (NB, 2H, 2W*Cout) f32 store


# --------------------------------------------------------------------------
# Wrapper-side operand packing (weights only; done once per call under jit).
# --------------------------------------------------------------------------
def _pack_operands(params, H, W, Cin, Cout):
    f32, bf16 = jnp.float32, jnp.bfloat16
    W2 = 2 * W
    C = Cout
    LP = W2 * C

    # ConvTranspose2d weight (Cin, Cout, 2, 2) -> merged (W*Cin, 2*LP), dy-major cols
    wt = jnp.transpose(params["w_up"].astype(f32), (2, 0, 3, 1))   # (dy, ci, dx, co)
    eye_w = jnp.eye(W, dtype=f32)
    wup = jnp.einsum("jk,dcxo->djckxo", eye_w, wt).reshape(2, W * Cin, LP)
    wup_m = jnp.transpose(wup, (1, 0, 2)).reshape(W * Cin, 2 * LP).astype(bf16)

    # Conv2d weight (Cout, Cin, 3, 3) -> 3 block-tridiagonal (LP, LP) per-dy matrices
    jj = jnp.arange(W2)
    shifts = jnp.stack([(jj[:, None] == (jj[None, :] + d)).astype(f32)
                        for d in (-1, 0, 1)])                      # (dx, j_in, j_out)

    def conv_tridiag(w):
        taps = jnp.transpose(w.astype(f32), (2, 3, 1, 0))          # (dy, dx, ci, co)
        wbd = jnp.einsum("xpq,yxio->ypiqo", shifts, taps)          # (dy, jin, ci, jout, co)
        return wbd.reshape(3, LP, LP).astype(bf16)

    w1bd = conv_tridiag(params["w1"])
    w2bd = conv_tridiag(params["w2"])

    # per-channel reduction / broadcast matrices for instance norm (kept f32)
    red = jnp.tile(jnp.eye(C, dtype=f32), (W2, 1))                 # (LP, C)
    redt = red.T                                                   # (C, LP)

    g1 = params["g1"].astype(f32).reshape(1, C)
    b1 = params["b1"].astype(f32).reshape(1, C)
    g2 = params["g2"].astype(f32).reshape(1, C)
    b2 = params["b2"].astype(f32).reshape(1, C)
    return wup_m, w1bd, g1, b1, w2bd, g2, b2, red, redt


def unet_up_block_forward(x_nchw, params):
    N, Cin, H, W = x_nchw.shape
    Cout = params["w_up"].shape[1]
    H2, W2 = 2 * H, 2 * W
    C = Cout
    LP = W2 * C

    # Samples per grid step: largest divisor of N up to 8 (raises matmul M to NB*2H).
    NB = 1
    for d in range(min(N, 8), 0, -1):
        if N % d == 0:
            NB = d
            break

    # NCHW -> packed bf16 (N, H, W*Cin); boundary layout only (interface is NCHW).
    xp = jnp.transpose(x_nchw, (0, 2, 3, 1)).reshape(N, H, W * Cin).astype(jnp.bfloat16)
    (wup_m, w1bd, g1, b1, w2bd, g2, b2, red, redt) = _pack_operands(
        params, H, W, Cin, Cout)

    kern = functools.partial(_up_block_kernel, NB=NB, H=H, W=W, Cin=Cin, Cout=Cout)
    c2 = lambda n: (0, 0)
    c3 = lambda n: (0, 0, 0)

    out_packed = pl.pallas_call(
        kern,
        grid=(N // NB,),
        in_specs=[
            pl.BlockSpec((NB, H, W * Cin), lambda n: (n, 0, 0)),
            pl.BlockSpec((W * Cin, 2 * LP), c2),   # constant-index weights
            pl.BlockSpec((3, LP, LP), c3),
            pl.BlockSpec((1, C), c2),
            pl.BlockSpec((1, C), c2),
            pl.BlockSpec((3, LP, LP), c3),
            pl.BlockSpec((1, C), c2),
            pl.BlockSpec((1, C), c2),
            pl.BlockSpec((LP, C), c2),
            pl.BlockSpec((C, LP), c2),
        ],
        out_specs=pl.BlockSpec((NB, H2, LP), lambda n: (n, 0, 0)),
        out_shape=jax.ShapeDtypeStruct((N, H2, LP), jnp.float32),
        scratch_shapes=[pltpu.VMEM((NB, H2 + 2, LP), jnp.float32)],
        compiler_params=pltpu.CompilerParams(
            dimension_semantics=("parallel",),
            vmem_limit_bytes=64 * 1024 * 1024,
        ),
    )(xp, wup_m, w1bd, g1, b1, w2bd, g2, b2, red, redt)

    out = out_packed.reshape(N, H2, W2, C)       # free view: packed -> NHWC
    return jnp.transpose(out, (0, 3, 1, 2))      # NHWC -> NCHW (PyTorch interface)


# --------------------------------------------------------------------------
# Pure-JAX f32 reference (independent code path) for correctness checking.
# --------------------------------------------------------------------------
def _reference_forward(x, p):
    N, _, H, W = x.shape
    Cout = p["w_up"].shape[1]
    up = jnp.einsum("ncij,coab->noiajb", x, p["w_up"],
                    precision=jax.lax.Precision.HIGHEST)
    up = up.reshape(N, Cout, 2 * H, 2 * W)

    def conv3(z, w):
        return jax.lax.conv_general_dilated(
            z, w, (1, 1), ((1, 1), (1, 1)),
            dimension_numbers=("NCHW", "OIHW", "NCHW"),
            precision=jax.lax.Precision.HIGHEST)

    def inorm(z, g, b):
        m = jnp.mean(z, axis=(2, 3), keepdims=True)
        v = jnp.mean((z - m) ** 2, axis=(2, 3), keepdims=True)
        return (z - m) * jax.lax.rsqrt(v + EPS) * g[None, :, None, None] \
            + b[None, :, None, None]

    def lrelu(z):
        return jnp.where(z >= 0, z, NEG_SLOPE * z)

    y = lrelu(inorm(conv3(up, p["w1"]), p["g1"], p["b1"]))
    y = lrelu(inorm(conv3(y, p["w2"]), p["g2"], p["b2"]))
    return y


def init_params(key, in_channels, out_channels):
    ks = jax.random.split(key, 7)
    scale = 0.1
    # norm_name assumed ("instance", {"affine": True}); gamma/beta are the affine params.
    return {
        "w_up": scale * jax.random.normal(ks[0], (in_channels, out_channels, 2, 2), jnp.float32),
        "w1": scale * jax.random.normal(ks[1], (out_channels, out_channels, 3, 3), jnp.float32),
        "g1": 1.0 + scale * jax.random.normal(ks[2], (out_channels,), jnp.float32),
        "b1": scale * jax.random.normal(ks[3], (out_channels,), jnp.float32),
        "w2": scale * jax.random.normal(ks[4], (out_channels, out_channels, 3, 3), jnp.float32),
        "g2": 1.0 + scale * jax.random.normal(ks[5], (out_channels,), jnp.float32),
        "b2": scale * jax.random.normal(ks[6], (out_channels,), jnp.float32),
    }


if __name__ == "__main__":
    # UnetUpBlock(spatial_dims=2, in_channels=8, out_channels=8, kernel_size=3,
    #             stride=1, upsample_kernel_size=2,
    #             norm_name=("instance", {"affine": True}))
    # NOTE: this module's forward takes only `inp` (no skip-connection concat).
    N, Cin, Cout, H, W = 2, 8, 8, 8, 8
    key = jax.random.PRNGKey(0)
    kx, kp = jax.random.split(key)
    x = jax.random.normal(kx, (N, Cin, H, W), jnp.float32)   # PyTorch NCHW input
    params = init_params(kp, Cin, Cout)

    out = jax.jit(unet_up_block_forward)(x, params)
    out = jax.block_until_ready(out)
    assert out.shape == (N, Cout, 2 * H, 2 * W), out.shape

    ref = _reference_forward(x, params)
    err = float(jnp.max(jnp.abs(out - ref)))
    # Tolerance accounts for bf16 MXU operands (accumulation stays f32);
    # InstanceNorm after each conv keeps errors relative, not absolute.
    assert err < 5e-2, f"max abs err vs reference: {err}"
    print("KERNEL_OK")
</pallas_src>

<mosaic_0001>
module attributes {stable_mosaic.version = 11 : i64} {
  func.func @_up_block_kernel(%arg0: i32, %arg1: memref<2x8x64xbf16, #tpu.memory_space<vmem>>, %arg2: memref<64x256xbf16, #tpu.memory_space<vmem>>, %arg3: memref<3x128x128xbf16, #tpu.memory_space<vmem>>, %arg4: memref<1x8xf32, #tpu.memory_space<vmem>>, %arg5: memref<1x8xf32, #tpu.memory_space<vmem>>, %arg6: memref<3x128x128xbf16, #tpu.memory_space<vmem>>, %arg7: memref<1x8xf32, #tpu.memory_space<vmem>>, %arg8: memref<1x8xf32, #tpu.memory_space<vmem>>, %arg9: memref<128x8xf32, #tpu.memory_space<vmem>>, %arg10: memref<8x128xf32, #tpu.memory_space<vmem>>, %arg11: memref<2x16x128xf32, #tpu.memory_space<vmem>>, %arg12: memref<2x18x128xf32, #tpu.memory_space<vmem>>) attributes {dimension_semantics = [#tpu.dimension_semantics<parallel>], iteration_bounds = array<i64: 1>, scalar_prefetch = 0 : i64, scratch_operands = 1 : i64, tpu.core_type = #tpu.core_type<tc>, window_params = [{transform_indices = @transform_0, window_bounds = array<i64: 2, 8, 64>}, {pipeline_mode = #tpu.pipeline_mode<synchronous>, transform_indices = @transform_1, window_bounds = array<i64: 64, 256>}, {pipeline_mode = #tpu.pipeline_mode<synchronous>, transform_indices = @transform_2, window_bounds = array<i64: 3, 128, 128>}, {pipeline_mode = #tpu.pipeline_mode<synchronous>, transform_indices = @transform_3, window_bounds = array<i64: 1, 8>}, {pipeline_mode = #tpu.pipeline_mode<synchronous>, transform_indices = @transform_4, window_bounds = array<i64: 1, 8>}, {pipeline_mode = #tpu.pipeline_mode<synchronous>, transform_indices = @transform_5, window_bounds = array<i64: 3, 128, 128>}, {pipeline_mode = #tpu.pipeline_mode<synchronous>, transform_indices = @transform_6, window_bounds = array<i64: 1, 8>}, {pipeline_mode = #tpu.pipeline_mode<synchronous>, transform_indices = @transform_7, window_bounds = array<i64: 1, 8>}, {pipeline_mode = #tpu.pipeline_mode<synchronous>, transform_indices = @transform_8, window_bounds = array<i64: 128, 8>}, {pipeline_mode = #tpu.pipeline_mode<synchronous>, transform_indices = @transform_9, window_bounds = array<i64: 8, 128>}, {transform_indices = @transform_10, window_bounds = array<i64: 2, 16, 128>}]} {
    %cst = arith.constant 0.000000e+00 : f32
    %0 = vector.broadcast %cst : f32 to vector<2x1x128xf32>
    %c0 = arith.constant 0 : index
    %c0_0 = arith.constant 0 : index
    %c0_1 = arith.constant 0 : index
    %1 = vector.load %arg12[%c0, %c0_0, %c0_1] : memref<2x18x128xf32, #tpu.memory_space<vmem>>, vector<2x1x128xf32>
    tpu.vector_store %arg12[%c0, %c0_0, %c0_1], %0 {strides = array<i32>} : memref<2x18x128xf32, #tpu.memory_space<vmem>>, vector<2x1x128xf32>,
    %c0_2 = arith.constant 0 : index
    %c17 = arith.constant 17 : index
    %c0_3 = arith.constant 0 : index
    %2 = vector.load %arg12[%c0_2, %c17, %c0_3] : memref<2x18x128xf32, #tpu.memory_space<vmem>>, vector<2x1x128xf32>
    tpu.vector_store %arg12[%c0_2, %c17, %c0_3], %0 {strides = array<i32>} : memref<2x18x128xf32, #tpu.memory_space<vmem>>, vector<2x1x128xf32>,
    %c0_4 = arith.constant 0 : index
    %c0_5 = arith.constant 0 : index
    %c0_6 = arith.constant 0 : index
    %3 = vector.load %arg1[%c0_4, %c0_5, %c0_6] : memref<2x8x64xbf16, #tpu.memory_space<vmem>>, vector<2x8x64xbf16>
    %4 = vector.shape_cast %3 : vector<2x8x64xbf16> to vector<16x64xbf16>
    %c0_7 = arith.constant 0 : index
    %c0_8 = arith.constant 0 : index
    %5 = vector.load %arg2[%c0_7, %c0_8] : memref<64x256xbf16, #tpu.memory_space<vmem>>, vector<64x256xbf16>
    %cst_9 = arith.constant dense<0.000000e+00> : vector<16x256xf32>
    %6 = tpu.matmul %4, %5, %cst_9 {dimension_numbers = #tpu.dot_dimension_numbers<[1], [0], [0], [1], [0, 0, 1, 1], [], []>} : vector<16x64xbf16>, vector<64x256xbf16>, vector<16x256xf32> -> vector<16x256xf32>
    %7 = vector.extract_strided_slice %6 {offsets = [0, 0], sizes = [16, 128], strides = [1, 1]} : vector<16x256xf32> to vector<16x128xf32>
    %8 = vector.shape_cast %7 : vector<16x128xf32> to vector<2x8x128xf32>
    %9 = vector.extract_strided_slice %6 {offsets = [0, 128], sizes = [16, 128], strides = [1, 1]} : vector<16x256xf32> to vector<16x128xf32>
    %10 = vector.shape_cast %9 : vector<16x128xf32> to vector<2x8x128xf32>
    %11 = vector.shape_cast %8 : vector<2x8x128xf32> to vector<2x8x1x128xf32>
    %12 = vector.shape_cast %10 : vector<2x8x128xf32> to vector<2x8x1x128xf32>
    %13 = tpu.concatenate %11, %12 in 2 : vector<2x8x1x128xf32>, vector<2x8x1x128xf32> -> vector<2x8x2x128xf32>
    %14 = vector.shape_cast %13 : vector<2x8x2x128xf32> to vector<2x16x128xf32>
    %c0_10 = arith.constant 0 : index
    %c1 = arith.constant 1 : index
    %c0_11 = arith.constant 0 : index
    %15 = vector.load %arg12[%c0_10, %c1, %c0_11] : memref<2x18x128xf32, #tpu.memory_space<vmem>>, vector<2x16x128xf32>
    tpu.vector_store %arg12[%c0_10, %c1, %c0_11], %14 {strides = array<i32>} : memref<2x18x128xf32, #tpu.memory_space<vmem>>, vector<2x16x128xf32>,
    %cst_12 = arith.constant 0.000000e+00 : f32
    %16 = vector.broadcast %cst_12 : f32 to vector<32x128xf32>
    %c0_13 = arith.constant 0 : index
    %c0_14 = arith.constant 0 : index
    %c0_15 = arith.constant 0 : index
    %17 = vector.load %arg12[%c0_13, %c0_14, %c0_15] : memref<2x18x128xf32, #tpu.memory_space<vmem>>, vector<2x16x128xf32>
    %18 = vector.shape_cast %17 : vector<2x16x128xf32> to vector<32x128xf32>
    %19 = arith.truncf %18 : vector<32x128xf32> to vector<32x128xbf16>
    %c0_16 = arith.constant 0 : index
    %c0_17 = arith.constant 0 : index
    %c0_18 = arith.constant 0 : index
    %20 = vector.load %arg3[%c0_16, %c0_17, %c0_18] : memref<3x128x128xbf16, #tpu.memory_space<vmem>>, vector<1x128x128xbf16>
    %21 = vector.shape_cast %20 : vector<1x128x128xbf16> to vector<128x128xbf16>
    %cst_19 = arith.constant dense<0.000000e+00> : vector<32x128xf32>
    %22 = tpu.matmul %19, %21, %cst_19 {dimension_numbers = #tpu.dot_dimension_numbers<[1], [0], [0], [1], [0, 0, 1, 1], [], []>} : vector<32x128xbf16>, vector<128x128xbf16>, vector<32x128xf32> -> vector<32x128xf32>
    %23 = arith.addf %16, %22 : vector<32x128xf32>
    %c0_20 = arith.constant 0 : index
    %c1_21 = arith.constant 1 : index
    %c0_22 = arith.constant 0 : index
    %24 = vector.load %arg12[%c0_20, %c1_21, %c0_22] : memref<2x18x128xf32, #tpu.memory_space<vmem>>, vector<2x16x128xf32>
    %25 = vector.shape_cast %24 : vector<2x16x128xf32> to vector<32x128xf32>
    %26 = arith.truncf %25 : vector<32x128xf32> to vector<32x128xbf16>
    %c1_23 = arith.constant 1 : index
    %c0_24 = arith.constant 0 : index
    %c0_25 = arith.constant 0 : index
    %27 = vector.load %arg3[%c1_23, %c0_24, %c0_25] : memref<3x128x128xbf16, #tpu.memory_space<vmem>>, vector<1x128x128xbf16>
    %28 = vector.shape_cast %27 : vector<1x128x128xbf16> to vector<128x128xbf16>
    %cst_26 = arith.constant dense<0.000000e+00> : vector<32x128xf32>
    %29 = tpu.matmul %26, %28, %cst_26 {dimension_numbers = #tpu.dot_dimension_numbers<[1], [0], [0], [1], [0, 0, 1, 1], [], []>} : vector<32x128xbf16>, vector<128x128xbf16>, vector<32x128xf32> -> vector<32x128xf32>
    %30 = arith.addf %23, %29 : vector<32x128xf32>
    %c0_27 = arith.constant 0 : index
    %c2 = arith.constant 2 : index
    %c0_28 = arith.constant 0 : index
    %31 = vector.load %arg12[%c0_27, %c2, %c0_28] : memref<2x18x128xf32, #tpu.memory_space<vmem>>, vector<2x16x128xf32>
    %32 = vector.shape_cast %31 : vector<2x16x128xf32> to vector<32x128xf32>
    %33 = arith.truncf %32 : vector<32x128xf32> to vector<32x128xbf16>
    %c2_29 = arith.constant 2 : index
    %c0_30 = arith.constant 0 : index
    %c0_31 = arith.constant 0 : index
    %34 = vector.load %arg3[%c2_29, %c0_30, %c0_31] : memref<3x128x128xbf16, #tpu.memory_space<vmem>>, vector<1x128x128xbf16>
    %35 = vector.shape_cast %34 : vector<1x128x128xbf16> to vector<128x128xbf16>
    %cst_32 = arith.constant dense<0.000000e+00> : vector<32x128xf32>
    %36 = tpu.matmul %33, %35, %cst_32 {dimension_numbers = #tpu.dot_dimension_numbers<[1], [0], [0], [1], [0, 0, 1, 1], [], []>} : vector<32x128xbf16>, vector<128x128xbf16>, vector<32x128xf32> -> vector<32x128xf32>
    %37 = arith.addf %30, %36 : vector<32x128xf32>
    %38 = vector.shape_cast %37 : vector<32x128xf32> to vector<2x16x128xf32>
    %cst_33 = arith.constant dense<0.000000e+00> : vector<2x128xf32>
    %39 = vector.multi_reduction <add>, %38, %cst_33 [1] : vector<2x16x128xf32> to vector<2x128xf32>
    %40 = arith.mulf %38, %38 : vector<2x16x128xf32>
    %cst_34 = arith.constant dense<0.000000e+00> : vector<2x128xf32>
    %41 = vector.multi_reduction <add>, %40, %cst_34 [1] : vector<2x16x128xf32> to vector<2x128xf32>
    %42 = tpu.concatenate %39, %41 in 0 : vector<2x128xf32>, vector<2x128xf32> -> vector<4x128xf32>
    %c0_35 = arith.constant 0 : index
    %c0_36 = arith.constant 0 : index
    %43 = vector.load %arg9[%c0_35, %c0_36] : memref<128x8xf32, #tpu.memory_space<vmem>>, vector<128x8xf32>
    %cst_37 = arith.constant dense<0.000000e+00> : vector<4x8xf32>
    %44 = tpu.matmul %42, %43, %cst_37 {dimension_numbers = #tpu.dot_dimension_numbers<[1], [0], [0], [1], [0, 0, 1, 1], [], []>} : vector<4x128xf32>, vector<128x8xf32>, vector<4x8xf32> -> vector<4x8xf32>
    %45 = vector.extract_strided_slice %44 {offsets = [0, 0], sizes = [2, 8], strides = [1, 1]} : vector<4x8xf32> to vector<2x8xf32>
    %cst_38 = arith.constant 3.906250e-03 : f32
    %46 = vector.broadcast %cst_38 : f32 to vector<2x8xf32>
    %47 = arith.mulf %45, %46 : vector<2x8xf32>
    %48 = vector.extract_strided_slice %44 {offsets = [2, 0], sizes = [2, 8], strides = [1, 1]} : vector<4x8xf32> to vector<2x8xf32>
    %cst_39 = arith.constant 3.906250e-03 : f32
    %49 = vector.broadcast %cst_39 : f32 to vector<2x8xf32>
    %50 = arith.mulf %48, %49 : vector<2x8xf32>
    %51 = arith.mulf %47, %47 : vector<2x8xf32>
    %52 = arith.subf %50, %51 : vector<2x8xf32>
    %cst_40 = arith.constant 9.99999974E-6 : f32
    %53 = vector.broadcast %cst_40 : f32 to vector<2x8xf32>
    %54 = arith.addf %52, %53 : vector<2x8xf32>
    %55 = math.rsqrt %54 : vector<2x8xf32>
    %c0_41 = arith.constant 0 : index
    %c0_42 = arith.constant 0 : index
    %56 = vector.load %arg4[%c0_41, %c0_42] : memref<1x8xf32, #tpu.memory_space<vmem>>, vector<1x8xf32>
    %57 = vector.broadcast %56 : vector<1x8xf32> to vector<2x8xf32>
    %58 = arith.mulf %57, %55 : vector<2x8xf32>
    %c0_43 = arith.constant 0 : index
    %c0_44 = arith.constant 0 : index
    %59 = vector.load %arg5[%c0_43, %c0_44] : memref<1x8xf32, #tpu.memory_space<vmem>>, vector<1x8xf32>
    %60 = arith.mulf %47, %58 : vector<2x8xf32>
    %61 = vector.broadcast %59 : vector<1x8xf32> to vector<2x8xf32>
    %62 = arith.subf %61, %60 : vector<2x8xf32>
    %63 = tpu.concatenate %58, %62 in 0 : vector<2x8xf32>, vector<2x8xf32> -> vector<4x8xf32>
    %c0_45 = arith.constant 0 : index
    %c0_46 = arith.constant 0 : index
    %64 = vector.load %arg10[%c0_45, %c0_46] : memref<8x128xf32, #tpu.memory_space<vmem>>, vector<8x128xf32>
    %cst_47 = arith.constant dense<0.000000e+00> : vector<4x128xf32>
    %65 = tpu.matmul %63, %64, %cst_47 {dimension_numbers = #tpu.dot_dimension_numbers<[1], [0], [0], [1], [0, 0, 1, 1], [], []>} : vector<4x8xf32>, vector<8x128xf32>, vector<4x128xf32> -> vector<4x128xf32>
    %66 = vector.extract_strided_slice %65 {offsets = [0, 0], sizes = [2, 128], strides = [1, 1]} : vector<4x128xf32> to vector<2x128xf32>
    %67 = vector.shape_cast %66 : vector<2x128xf32> to vector<2x1x128xf32>
    %68 = vector.broadcast %67 : vector<2x1x128xf32> to vector<2x16x128xf32>
    %69 = arith.mulf %38, %68 : vector<2x16x128xf32>
    %70 = vector.extract_strided_slice %65 {offsets = [2, 0], sizes = [2, 128], strides = [1, 1]} : vector<4x128xf32> to vector<2x128xf32>
    %71 = vector.shape_cast %70 : vector<2x128xf32> to vector<2x1x128xf32>
    %72 = vector.broadcast %71 : vector<2x1x128xf32> to vector<2x16x128xf32>
    %73 = arith.addf %69, %72 : vector<2x16x128xf32>
    %cst_48 = arith.constant 0.000000e+00 : f32
    %74 = vector.broadcast %cst_48 : f32 to vector<2x16x128xf32>
    %75 = arith.cmpf oge, %73, %74 : vector<2x16x128xf32>
    %cst_49 = arith.constant 0.00999999977 : f32
    %76 = vector.broadcast %cst_49 : f32 to vector<2x16x128xf32>
    %77 = arith.mulf %76, %73 : vector<2x16x128xf32>
    %78 = arith.select %75, %73, %77 : vector<2x16x128xi1>, vector<2x16x128xf32>
    %c0_50 = arith.constant 0 : index
    %c1_51 = arith.constant 1 : index
    %c0_52 = arith.constant 0 : index
    %79 = vector.load %arg12[%c0_50, %c1_51, %c0_52] : memref<2x18x128xf32, #tpu.memory_space<vmem>>, vector<2x16x128xf32>
    tpu.vector_store %arg12[%c0_50, %c1_51, %c0_52], %78 {strides = array<i32>} : memref<2x18x128xf32, #tpu.memory_space<vmem>>, vector<2x16x128xf32>,
    %cst_53 = arith.constant 0.000000e+00 : f32
    %80 = vector.broadcast %cst_53 : f32 to vector<32x128xf32>
    %c0_54 = arith.constant 0 : index
    %c0_55 = arith.constant 0 : index
    %c0_56 = arith.constant 0 : index
    %81 = vector.load %arg12[%c0_54, %c0_55, %c0_56] : memref<2x18x128xf32, #tpu.memory_space<vmem>>, vector<2x16x128xf32>
    %82 = vector.shape_cast %81 : vector<2x16x128xf32> to vector<32x128xf32>
    %83 = arith.truncf %82 : vector<32x128xf32> to vector<32x128xbf16>
    %c0_57 = arith.constant 0 : index
    %c0_58 = arith.constant 0 : index
    %c0_59 = arith.constant 0 : index
    %84 = vector.load %arg6[%c0_57, %c0_58, %c0_59] : memref<3x128x128xbf16, #tpu.memory_space<vmem>>, vector<1x128x128xbf16>
    %85 = vector.shape_cast %84 : vector<1x128x128xbf16> to vector<128x128xbf16>
    %cst_60 = arith.constant dense<0.000000e+00> : vector<32x128xf32>
    %86 = tpu.matmul %83, %85, %cst_60 {dimension_numbers = #tpu.dot_dimension_numbers<[1], [0], [0], [1], [0, 0, 1, 1], [], []>} : vector<32x128xbf16>, vector<128x128xbf16>, vector<32x128xf32> -> vector<32x128xf32>
    %87 = arith.addf %80, %86 : vector<32x128xf32>
    %c0_61 = arith.constant 0 : index
    %c1_62 = arith.constant 1 : index
    %c0_63 = arith.constant 0 : index
    %88 = vector.load %arg12[%c0_61, %c1_62, %c0_63] : memref<2x18x128xf32, #tpu.memory_space<vmem>>, vector<2x16x128xf32>
    %89 = vector.shape_cast %88 : vector<2x16x128xf32> to vector<32x128xf32>
    %90 = arith.truncf %89 : vector<32x128xf32> to vector<32x128xbf16>
    %c1_64 = arith.constant 1 : index
    %c0_65 = arith.constant 0 : index
    %c0_66 = arith.constant 0 : index
    %91 = vector.load %arg6[%c1_64, %c0_65, %c0_66] : memref<3x128x128xbf16, #tpu.memory_space<vmem>>, vector<1x128x128xbf16>
    %92 = vector.shape_cast %91 : vector<1x128x128xbf16> to vector<128x128xbf16>
    %cst_67 = arith.constant dense<0.000000e+00> : vector<32x128xf32>
    %93 = tpu.matmul %90, %92, %cst_67 {dimension_numbers = #tpu.dot_dimension_numbers<[1], [0], [0], [1], [0, 0, 1, 1], [], []>} : vector<32x128xbf16>, vector<128x128xbf16>, vector<32x128xf32> -> vector<32x128xf32>
    %94 = arith.addf %87, %93 : vector<32x128xf32>
    %c0_68 = arith.constant 0 : index
    %c2_69 = arith.constant 2 : index
    %c0_70 = arith.constant 0 : index
    %95 = vector.load %arg12[%c0_68, %c2_69, %c0_70] : memref<2x18x128xf32, #tpu.memory_space<vmem>>, vector<2x16x128xf32>
    %96 = vector.shape_cast %95 : vector<2x16x128xf32> to vector<32x128xf32>
    %97 = arith.truncf %96 : vector<32x128xf32> to vector<32x128xbf16>
    %c2_71 = arith.constant 2 : index
    %c0_72 = arith.constant 0 : index
    %c0_73 = arith.constant 0 : index
    %98 = vector.load %arg6[%c2_71, %c0_72, %c0_73] : memref<3x128x128xbf16, #tpu.memory_space<vmem>>, vector<1x128x128xbf16>
    %99 = vector.shape_cast %98 : vector<1x128x128xbf16> to vector<128x128xbf16>
    %cst_74 = arith.constant dense<0.000000e+00> : vector<32x128xf32>
    %100 = tpu.matmul %97, %99, %cst_74 {dimension_numbers = #tpu.dot_dimension_numbers<[1], [0], [0], [1], [0, 0, 1, 1], [], []>} : vector<32x128xbf16>, vector<128x128xbf16>, vector<32x128xf32> -> vector<32x128xf32>
    %101 = arith.addf %94, %100 : vector<32x128xf32>
    %102 = vector.shape_cast %101 : vector<32x128xf32> to vector<2x16x128xf32>
    %cst_75 = arith.constant dense<0.000000e+00> : vector<2x128xf32>
    %103 = vector.multi_reduction <add>, %102, %cst_75 [1] : vector<2x16x128xf32> to vector<2x128xf32>
    %104 = arith.mulf %102, %102 : vector<2x16x128xf32>
    %cst_76 = arith.constant dense<0.000000e+00> : vector<2x128xf32>
    %105 = vector.multi_reduction <add>, %104, %cst_76 [1] : vector<2x16x128xf32> to vector<2x128xf32>
    %106 = tpu.concatenate %103, %105 in 0 : vector<2x128xf32>, vector<2x128xf32> -> vector<4x128xf32>
    %c0_77 = arith.constant 0 : index
    %c0_78 = arith.constant 0 : index
    %107 = vector.load %arg9[%c0_77, %c0_78] : memref<128x8xf32, #tpu.memory_space<vmem>>, vector<128x8xf32>
    %cst_79 = arith.constant dense<0.000000e+00> : vector<4x8xf32>
    %108 = tpu.matmul %106, %107, %cst_79 {dimension_numbers = #tpu.dot_dimension_numbers<[1], [0], [0], [1], [0, 0, 1, 1], [], []>} : vector<4x128xf32>, vector<128x8xf32>, vector<4x8xf32> -> vector<4x8xf32>
    %109 = vector.extract_strided_slice %108 {offsets = [0, 0], sizes = [2, 8], strides = [1, 1]} : vector<4x8xf32> to vector<2x8xf32>
    %cst_80 = arith.constant 3.906250e-03 : f32
    %110 = vector.broadcast %cst_80 : f32 to vector<2x8xf32>
    %111 = arith.mulf %109, %110 : vector<2x8xf32>
    %112 = vector.extract_strided_slice %108 {offsets = [2, 0], sizes = [2, 8], strides = [1, 1]} : vector<4x8xf32> to vector<2x8xf32>
    %cst_81 = arith.constant 3.906250e-03 : f32
    %113 = vector.broadcast %cst_81 : f32 to vector<2x8xf32>
    %114 = arith.mulf %112, %113 : vector<2x8xf32>
    %115 = arith.mulf %111, %111 : vector<2x8xf32>
    %116 = arith.subf %114, %115 : vector<2x8xf32>
    %cst_82 = arith.constant 9.99999974E-6 : f32
    %117 = vector.broadcast %cst_82 : f32 to vector<2x8xf32>
    %118 = arith.addf %116, %117 : vector<2x8xf32>
    %119 = math.rsqrt %118 : vector<2x8xf32>
    %c0_83 = arith.constant 0 : index
    %c0_84 = arith.constant 0 : index
    %120 = vector.load %arg7[%c0_83, %c0_84] : memref<1x8xf32, #tpu.memory_space<vmem>>, vector<1x8xf32>
    %121 = vector.broadcast %120 : vector<1x8xf32> to vector<2x8xf32>
    %122 = arith.mulf %121, %119 : vector<2x8xf32>
    %c0_85 = arith.constant 0 : index
    %c0_86 = arith.constant 0 : index
    %123 = vector.load %arg8[%c0_85, %c0_86] : memref<1x8xf32, #tpu.memory_space<vmem>>, vector<1x8xf32>
    %124 = arith.mulf %111, %122 : vector<2x8xf32>
    %125 = vector.broadcast %123 : vector<1x8xf32> to vector<2x8xf32>
    %126 = arith.subf %125, %124 : vector<2x8xf32>
    %127 = tpu.concatenate %122, %126 in 0 : vector<2x8xf32>, vector<2x8xf32> -> vector<4x8xf32>
    %c0_87 = arith.constant 0 : index
    %c0_88 = arith.constant 0 : index
    %128 = vector.load %arg10[%c0_87, %c0_88] : memref<8x128xf32, #tpu.memory_space<vmem>>, vector<8x128xf32>
    %cst_89 = arith.constant dense<0.000000e+00> : vector<4x128xf32>
    %129 = tpu.matmul %127, %128, %cst_89 {dimension_numbers = #tpu.dot_dimension_numbers<[1], [0], [0], [1], [0, 0, 1, 1], [], []>} : vector<4x8xf32>, vector<8x128xf32>, vector<4x128xf32> -> vector<4x128xf32>
    %130 = vector.extract_strided_slice %129 {offsets = [0, 0], sizes = [2, 128], strides = [1, 1]} : vector<4x128xf32> to vector<2x128xf32>
    %131 = vector.shape_cast %130 : vector<2x128xf32> to vector<2x1x128xf32>
    %132 = vector.broadcast %131 : vector<2x1x128xf32> to vector<2x16x128xf32>
    %133 = arith.mulf %102, %132 : vector<2x16x128xf32>
    %134 = vector.extract_strided_slice %129 {offsets = [2, 0], sizes = [2, 128], strides = [1, 1]} : vector<4x128xf32> to vector<2x128xf32>
    %135 = vector.shape_cast %134 : vector<2x128xf32> to vector<2x1x128xf32>
    %136 = vector.broadcast %135 : vector<2x1x128xf32> to vector<2x16x128xf32>
    %137 = arith.addf %133, %136 : vector<2x16x128xf32>
    %cst_90 = arith.constant 0.000000e+00 : f32
    %138 = vector.broadcast %cst_90 : f32 to vector<2x16x128xf32>
    %139 = arith.cmpf oge, %137, %138 : vector<2x16x128xf32>
    %cst_91 = arith.constant 0.00999999977 : f32
    %140 = vector.broadcast %cst_91 : f32 to vector<2x16x128xf32>
    %141 = arith.mulf %140, %137 : vector<2x16x128xf32>
    %142 = arith.select %139, %137, %141 : vector<2x16x128xi1>, vector<2x16x128xf32>
    %c0_92 = arith.constant 0 : index
    %c0_93 = arith.constant 0 : index
    %c0_94 = arith.constant 0 : index
    %143 = vector.load %arg11[%c0_92, %c0_93, %c0_94] : memref<2x16x128xf32, #tpu.memory_space<vmem>>, vector<2x16x128xf32>
    tpu.vector_store %arg11[%c0_92, %c0_93, %c0_94], %142 {strides = array<i32>} : memref<2x16x128xf32, #tpu.memory_space<vmem>>, vector<2x16x128xf32>,
    return
  }
  func.func @transform_0(%arg0: i32) -> (i32, i32, i32) {
    %c0_i32 = arith.constant 0 : i32
    %c0_i32_0 = arith.constant 0 : i32
    %c0_i32_1 = arith.constant 0 : i32
    return %arg0, %c0_i32, %c0_i32_0 : i32, i32, i32
  }
  func.func @transform_1(%arg0: i32) -> (i32, i32) {
    %c0_i32 = arith.constant 0 : i32
    %c0_i32_0 = arith.constant 0 : i32
    %c0_i32_1 = arith.constant 0 : i32
    return %c0_i32, %c0_i32_0 : i32, i32
  }
  func.func @transform_2(%arg0: i32) -> (i32, i32, i32) {
    %c0_i32 = arith.constant 0 : i32
    %c0_i32_0 = arith.constant 0 : i32
    %c0_i32_1 = arith.constant 0 : i32
    %c0_i32_2 = arith.constant 0 : i32
    return %c0_i32, %c0_i32_0, %c0_i32_1 : i32, i32, i32
  }
  func.func @transform_3(%arg0: i32) -> (i32, i32) {
    %c0_i32 = arith.constant 0 : i32
    %c0_i32_0 = arith.constant 0 : i32
    %c0_i32_1 = arith.constant 0 : i32
    return %c0_i32, %c0_i32_0 : i32, i32
  }
  func.func @transform_4(%arg0: i32) -> (i32, i32) {
    %c0_i32 = arith.constant 0 : i32
    %c0_i32_0 = arith.constant 0 : i32
    %c0_i32_1 = arith.constant 0 : i32
    return %c0_i32, %c0_i32_0 : i32, i32
  }
  func.func @transform_5(%arg0: i32) -> (i32, i32, i32) {
    %c0_i32 = arith.constant 0 : i32
    %c0_i32_0 = arith.constant 0 : i32
    %c0_i32_1 = arith.constant 0 : i32
    %c0_i32_2 = arith.constant 0 : i32
    return %c0_i32, %c0_i32_0, %c0_i32_1 : i32, i32, i32
  }
  func.func @transform_6(%arg0: i32) -> (i32, i32) {
    %c0_i32 = arith.constant 0 : i32
    %c0_i32_0 = arith.constant 0 : i32
    %c0_i32_1 = arith.constant 0 : i32
    return %c0_i32, %c0_i32_0 : i32, i32
  }
  func.func @transform_7(%arg0: i32) -> (i32, i32) {
    %c0_i32 = arith.constant 0 : i32
    %c0_i32_0 = arith.constant 0 : i32
    %c0_i32_1 = arith.constant 0 : i32
    return %c0_i32, %c0_i32_0 : i32, i32
  }
  func.func @transform_8(%arg0: i32) -> (i32, i32) {
    %c0_i32 = arith.constant 0 : i32
    %c0_i32_0 = arith.constant 0 : i32
    %c0_i32_1 = arith.constant 0 : i32
    return %c0_i32, %c0_i32_0 : i32, i32
  }
  func.func @transform_9(%arg0: i32) -> (i32, i32) {
    %c0_i32 = arith.constant 0 : i32
    %c0_i32_0 = arith.constant 0 : i32
    %c0_i32_1 = arith.constant 0 : i32
    return %c0_i32, %c0_i32_0 : i32, i32
  }
  func.func @transform_10(%arg0: i32) -> (i32, i32, i32) {
    %c0_i32 = arith.constant 0 : i32
    %c0_i32_0 = arith.constant 0 : i32
    %c0_i32_1 = arith.constant 0 : i32
    return %arg0, %c0_i32, %c0_i32_0 : i32, i32, i32
  }
}

</mosaic_0001>

<llo_original>
// kernel: tile.9
$region0: #{tile.9}
  %s0 = inlined_call_operand.vmem [shape: f32[16,8,8], index: 0, kind: input, shape index: {}]
  %s1 = inlined_call_operand.vmem [shape: f32[128,8], index: 1, kind: output, shape index: {}]
  %s2 = smov 3
  %v3 = vld [vmem:[%s0] ss:$16 sm:%s2]
  %s4 = smov 12
  %v5 = vld [vmem:[%s0] ss:$16 sm:%s4]
  %vm6 = vcmask 1043458
  %v7 = vsel %vm6, %v5, %v3
  %s8 = smov 48
  %v9 = vld [vmem:[%s0] ss:$16 sm:%s8]
  %vm10 = vcmask 1045508
  %v11 = vsel %vm10, %v9, %v7
  %s12 = smov 192
  %v13 = vld [vmem:[%s0] ss:$16 sm:%s12]
  %vm14 = vcmask 1047558
  %v15 = vsel %vm14, %v13, %v11
  %vm16 = vcmask 64512
  %17 = vst.msk [vmem:[%s1] sm:$0xff] %vm16, %v15
  %s18 = scalar_lea.vmem %s0, 15
  %s19 = smov 3
  %v20 = vld [vmem:[%s18] ss:$16 sm:%s19]
  %s21 = scalar_lea.vmem %s0, 15
  %s22 = smov 12
  %v23 = vld [vmem:[%s21] ss:$16 sm:%s22]
  %vm24 = vcmask 1043458
  %v25 = vsel %vm24, %v23, %v20
  %s26 = scalar_lea.vmem %s0, 15
  %s27 = smov 48
  %v28 = vld [vmem:[%s26] ss:$16 sm:%s27]
  %vm29 = vcmask 1045508
  %v30 = vsel %vm29, %v28, %v25
  %s31 = scalar_lea.vmem %s0, 15
  %s32 = smov 192
  %v33 = vld [vmem:[%s31] ss:$16 sm:%s32]
  %vm34 = vcmask 1047558
  %v35 = vsel %vm34, %v33, %v30
  %36 = vrot.lane.b32.xlu0 %v35, 120
  %v37 = vpop.permute.xlu0 %36
  %vm38 = vcmask 1048512
  %39 = vst.msk [vmem:[%s1] sm:$0xff] %vm38, %v37
  %s40 = scalar_lea.vmem %s0, 14
  %s41 = smov 3
  %v42 = vld [vmem:[%s40] ss:$16 sm:%s41]
  %s43 = scalar_lea.vmem %s0, 14
  %s44 = smov 12
  %v45 = vld [vmem:[%s43] ss:$16 sm:%s44]
  %vm46 = vcmask 1043458
  %v47 = vsel %vm46, %v45, %v42
  %s48 = scalar_lea.vmem %s0, 14
  %s49 = smov 48
  %v50 = vld [vmem:[%s48] ss:$16 sm:%s49]
  %vm51 = vcmask 1045508
  %v52 = vsel %vm51, %v50, %v47
  %s53 = scalar_lea.vmem %s0, 14
  %s54 = smov 192
  %v55 = vld [vmem:[%s53] ss:$16 sm:%s54]
  %vm56 = vcmask 1047558
  %v57 = vsel %vm56, %v55, %v52
  %58 = vrot.lane.b32.xlu0 %v57, 112
  %v59 = vpop.permute.xlu0 %58
  %vm60 = vcmask 982912
  %61 = vst.msk [vmem:[%s1] sm:$0xff] %vm60, %v59
  %s62 = scalar_lea.vmem %s0, 13
  %s63 = smov 3
  %v64 = vld [vmem:[%s62] ss:$16 sm:%s63]
  %s65 = scalar_lea.vmem %s0, 13
  %s66 = smov 12
  %v67 = vld [vmem:[%s65] ss:$16 sm:%s66]
  %vm68 = vcmask 1043458
  %v69 = vsel %vm68, %v67, %v64
  %s70 = scalar_lea.vmem %s0, 13
  %s71 = smov 48
  %v72 = vld [vmem:[%s70] ss:$16 sm:%s71]
  %vm73 = vcmask 1045508
  %v74 = vsel %vm73, %v72, %v69
  %s75 = scalar_lea.vmem %s0, 13
  %s76 = smov 192
  %v77 = vld [vmem:[%s75] ss:$16 sm:%s76]
  %vm78 = vcmask 1047558
  %v79 = vsel %vm78, %v77, %v74
  %80 = vrot.lane.b32.xlu0 %v79, 104
  %v81 = vpop.permute.xlu0 %80
  %vm82 = vcmask 917312
  %83 = vst.msk [vmem:[%s1] sm:$0xff] %vm82, %v81
  %s84 = scalar_lea.vmem %s0, 12
  %s85 = smov 3
  %v86 = vld [vmem:[%s84] ss:$16 sm:%s85]
  %s87 = scalar_lea.vmem %s0, 12
  %s88 = smov 12
  %v89 = vld [vmem:[%s87] ss:$16 sm:%s88]
  %vm90 = vcmask 1043458
  %v91 = vsel %vm90, %v89, %v86
  %s92 = scalar_lea.vmem %s0, 12
  %s93 = smov 48
  %v94 = vld [vmem:[%s92] ss:$16 sm:%s93]
  %vm95 = vcmask 1045508
  %v96 = vsel %vm95, %v94, %v91
  %s97 = scalar_lea.vmem %s0, 12
  %s98 = smov 192
  %v99 = vld [vmem:[%s97] ss:$16 sm:%s98]
  %vm100 = vcmask 1047558
  %v101 = vsel %vm100, %v99, %v96
  %102 = vrot.lane.b32.xlu0 %v101, 96
  %v103 = vpop.permute.xlu0 %102
  %vm104 = vcmask 851712
  %105 = vst.msk [vmem:[%s1] sm:$0xff] %vm104, %v103
  %s106 = scalar_lea.vmem %s0, 11
  %s107 = smov 3
  %v108 = vld [vmem:[%s106] ss:$16 sm:%s107]
  %s109 = scalar_lea.vmem %s0, 11
  %s110 = smov 12
  %v111 = vld [vmem:[%s109] ss:$16 sm:%s110]
  %vm112 = vcmask 1043458
  %v113 = vsel %vm112, %v111, %v108
  %s114 = scalar_lea.vmem %s0, 11
  %s115 = smov 48
  %v116 = vld [vmem:[%s114] ss:$16 sm:%s115]
  %vm117 = vcmask 1045508
  %v118 = vsel %vm117, %v116, %v113
  %s119 = scalar_lea.vmem %s0, 11
  %s120 = smov 192
  %v121 = vld [vmem:[%s119] ss:$16 sm:%s120]
  %vm122 = vcmask 1047558
  %v123 = vsel %vm122, %v121, %v118
  %124 = vrot.lane.b32.xlu0 %v123, 88
  %v125 = vpop.permute.xlu0 %124
  %vm126 = vcmask 786112
  %127 = vst.msk [vmem:[%s1] sm:$0xff] %vm126, %v125
  %s128 = scalar_lea.vmem %s0, 10
  %s129 = smov 3
  %v130 = vld [vmem:[%s128] ss:$16 sm:%s129]
  %s131 = scalar_lea.vmem %s0, 10
  %s132 = smov 12
  %v133 = vld [vmem:[%s131] ss:$16 sm:%s132]
  %vm134 = vcmask 1043458
  %v135 = vsel %vm134, %v133, %v130
  %s136 = scalar_lea.vmem %s0, 10
  %s137 = smov 48
  %v138 = vld [vmem:[%s136] ss:$16 sm:%s137]
  %vm139 = vcmask 1045508
  %v140 = vsel %vm139, %v138, %v135
  %s141 = scalar_lea.vmem %s0, 10
  %s142 = smov 192
  %v143 = vld [vmem:[%s141] ss:$16 sm:%s142]
  %vm144 = vcmask 1047558
  %v145 = vsel %vm144, %v143, %v140
  %146 = vrot.lane.b32.xlu0 %v145, 80
  %v147 = vpop.permute.xlu0 %146
  %vm148 = vcmask 720512
  %149 = vst.msk [vmem:[%s1] sm:$0xff] %vm148, %v147
  %s150 = scalar_lea.vmem %s0, 9
  %s151 = smov 3
  %v152 = vld [vmem:[%s150] ss:$16 sm:%s151]
  %s153 = scalar_lea.vmem %s0, 9
  %s154 = smov 12
  %v155 = vld [vmem:[%s153] ss:$16 sm:%s154]
  %vm156 = vcmask 1043458
  %v157 = vsel %vm156, %v155, %v152
  %s158 = scalar_lea.vmem %s0, 9
  %s159 = smov 48
  %v160 = vld [vmem:[%s158] ss:$16 sm:%s159]
  %vm161 = vcmask 1045508
  %v162 = vsel %vm161, %v160, %v157
  %s163 = scalar_lea.vmem %s0, 9
  %s164 = smov 192
  %v165 = vld [vmem:[%s163] ss:$16 sm:%s164]
  %vm166 = vcmask 1047558
  %v167 = vsel %vm166, %v165, %v162
  %168 = vrot.lane.b32.xlu0 %v167, 72
  %v169 = vpop.permute.xlu0 %168
  %vm170 = vcmask 654912
  %171 = vst.msk [vmem:[%s1] sm:$0xff] %vm170, %v169
  %s172 = scalar_lea.vmem %s0, 8
  %s173 = smov 3
  %v174 = vld [vmem:[%s172] ss:$16 sm:%s173]
  %s175 = scalar_lea.vmem %s0, 8
  %s176 = smov 12
  %v177 = vld [vmem:[%s175] ss:$16 sm:%s176]
  %vm178 = vcmask 1043458
  %v179 = vsel %vm178, %v177, %v174
  %s180 = scalar_lea.vmem %s0, 8
  %s181 = smov 48
  %v182 = vld [vmem:[%s180] ss:$16 sm:%s181]
  %vm183 = vcmask 1045508
  %v184 = vsel %vm183, %v182, %v179
  %s185 = scalar_lea.vmem %s0, 8
  %s186 = smov 192
  %v187 = vld [vmem:[%s185] ss:$16 sm:%s186]
  %vm188 = vcmask 1047558
  %v189 = vsel %vm188, %v187, %v184
  %190 = vrot.lane.b32.xlu0 %v189, 64
  %v191 = vpop.permute.xlu0 %190
  %vm192 = vcmask 589312
  %193 = vst.msk [vmem:[%s1] sm:$0xff] %vm192, %v191
  %s194 = scalar_lea.vmem %s0, 7
  %s195 = smov 3
  %v196 = vld [vmem:[%s194] ss:$16 sm:%s195]
  %s197 = scalar_lea.vmem %s0, 7
  %s198 = smov 12
  %v199 = vld [vmem:[%s197] ss:$16 sm:%s198]
  %vm200 = vcmask 1043458
  %v201 = vsel %vm200, %v199, %v196
  %s202 = scalar_lea.vmem %s0, 7
  %s203 = smov 48
  %v204 = vld [vmem:[%s202] ss:$16 sm:%s203]
  %vm205 = vcmask 1045508
  %v206 = vsel %vm205, %v204, %v201
  %s207 = scalar_lea.vmem %s0, 7
  %s208 = smov 192
  %v209 = vld [vmem:[%s207] ss:$16 sm:%s208]
  %vm210 = vcmask 1047558
  %v211 = vsel %vm210, %v209, %v206
  %212 = vrot.lane.b32.xlu0 %v211, 56
  %v213 = vpop.permute.xlu0 %212
  %vm214 = vcmask 523712
  %215 = vst.msk [vmem:[%s1] sm:$0xff] %vm214, %v213
  %s216 = scalar_lea.vmem %s0, 6
  %s217 = smov 3
  %v218 = vld [vmem:[%s216] ss:$16 sm:%s217]
  %s219 = scalar_lea.vmem %s0, 6
  %s220 = smov 12
  %v221 = vld [vmem:[%s219] ss:$16 sm:%s220]
  %vm222 = vcmask 1043458
  %v223 = vsel %vm222, %v221, %v218
  %s224 = scalar_lea.vmem %s0, 6
  %s225 = smov 48
  %v226 = vld [vmem:[%s224] ss:$16 sm:%s225]
  %vm227 = vcmask 1045508
  %v228 = vsel %vm227, %v226, %v223
  %s229 = scalar_lea.vmem %s0, 6
  %s230 = smov 192
  %v231 = vld [vmem:[%s229] ss:$16 sm:%s230]
  %vm232 = vcmask 1047558
  %v233 = vsel %vm232, %v231, %v228
  %234 = vrot.lane.b32.xlu0 %v233, 48
  %v235 = vpop.permute.xlu0 %234
  %vm236 = vcmask 458112
  %237 = vst.msk [vmem:[%s1] sm:$0xff] %vm236, %v235
  %s238 = scalar_lea.vmem %s0, 5
  %s239 = smov 3
  %v240 = vld [vmem:[%s238] ss:$16 sm:%s239]
  %s241 = scalar_lea.vmem %s0, 5
  %s242 = smov 12
  %v243 = vld [vmem:[%s241] ss:$16 sm:%s242]
  %vm244 = vcmask 1043458
  %v245 = vsel %vm244, %v243, %v240
  %s246 = scalar_lea.vmem %s0, 5
  %s247 = smov 48
  %v248 = vld [vmem:[%s246] ss:$16 sm:%s247]
  %vm249 = vcmask 1045508
  %v250 = vsel %vm249, %v248, %v245
  %s251 = scalar_lea.vmem %s0, 5
  %s252 = smov 192
  %v253 = vld [vmem:[%s251] ss:$16 sm:%s252]
  %vm254 = vcmask 1047558
  %v255 = vsel %vm254, %v253, %v250
  %256 = vrot.lane.b32.xlu0 %v255, 40
  %v257 = vpop.permute.xlu0 %256
  %vm258 = vcmask 392512
  %259 = vst.msk [vmem:[%s1] sm:$0xff] %vm258, %v257
  %s260 = scalar_lea.vmem %s0, 4
  %s261 = smov 3
  %v262 = vld [vmem:[%s260] ss:$16 sm:%s261]
  %s263 = scalar_lea.vmem %s0, 4
  %s264 = smov 12
  %v265 = vld [vmem:[%s263] ss:$16 sm:%s264]
  %vm266 = vcmask 1043458
  %v267 = vsel %vm266, %v265, %v262
  %s268 = scalar_lea.vmem %s0, 4
  %s269 = smov 48
  %v270 = vld [vmem:[%s268] ss:$16 sm:%s269]
  %vm271 = vcmask 1045508
  %v272 = vsel %vm271, %v270, %v267
  %s273 = scalar_lea.vmem %s0, 4
  %s274 = smov 192
  %v275 = vld [vmem:[%s273] ss:$16 sm:%s274]
  %vm276 = vcmask 1047558
  %v277 = vsel %vm276, %v275, %v272
  %278 = vrot.lane.b32.xlu0 %v277, 32
  %v279 = vpop.permute.xlu0 %278
  %vm280 = vcmask 326912
  %281 = vst.msk [vmem:[%s1] sm:$0xff] %vm280, %v279
  %s282 = scalar_lea.vmem %s0, 3
  %s283 = smov 3
  %v284 = vld [vmem:[%s282] ss:$16 sm:%s283]
  %s285 = scalar_lea.vmem %s0, 3
  %s286 = smov 12
  %v287 = vld [vmem:[%s285] ss:$16 sm:%s286]
  %vm288 = vcmask 1043458
  %v289 = vsel %vm288, %v287, %v284
  %s290 = scalar_lea.vmem %s0, 3
  %s291 = smov 48
  %v292 = vld [vmem:[%s290] ss:$16 sm:%s291]
  %vm293 = vcmask 1045508
  %v294 = vsel %vm293, %v292, %v289
  %s295 = scalar_lea.vmem %s0, 3
  %s296 = smov 192
  %v297 = vld [vmem:[%s295] ss:$16 sm:%s296]
  %vm298 = vcmask 1047558
  %v299 = vsel %vm298, %v297, %v294
  %300 = vrot.lane.b32.xlu0 %v299, 24
  %v301 = vpop.permute.xlu0 %300
  %vm302 = vcmask 261312
  %303 = vst.msk [vmem:[%s1] sm:$0xff] %vm302, %v301
  %s304 = scalar_lea.vmem %s0, 2
  %s305 = smov 3
  %v306 = vld [vmem:[%s304] ss:$16 sm:%s305]
  %s307 = scalar_lea.vmem %s0, 2
  %s308 = smov 12
  %v309 = vld [vmem:[%s307] ss:$16 sm:%s308]
  %vm310 = vcmask 1043458
  %v311 = vsel %vm310, %v309, %v306
  %s312 = scalar_lea.vmem %s0, 2
  %s313 = smov 48
  %v314 = vld [vmem:[%s312] ss:$16 sm:%s313]
  %vm315 = vcmask 1045508
  %v316 = vsel %vm315, %v314, %v311
  %s317 = scalar_lea.vmem %s0, 2
  %s318 = smov 192
  %v319 = vld [vmem:[%s317] ss:$16 sm:%s318]
  %vm320 = vcmask 1047558
  %v321 = vsel %vm320, %v319, %v316
  %322 = vrot.lane.b32.xlu0 %v321, 16
  %v323 = vpop.permute.xlu0 %322
  %vm324 = vcmask 195712
  %325 = vst.msk [vmem:[%s1] sm:$0xff] %vm324, %v323
  %s326 = scalar_lea.vmem %s0, 1
  %s327 = smov 3
  %v328 = vld [vmem:[%s326] ss:$16 sm:%s327]
  %s329 = scalar_lea.vmem %s0, 1
  %s330 = smov 12
  %v331 = vld [vmem:[%s329] ss:$16 sm:%s330]
  %vm332 = vcmask 1043458
  %v333 = vsel %vm332, %v331, %v328
  %s334 = scalar_lea.vmem %s0, 1
  %s335 = smov 48
  %v336 = vld [vmem:[%s334] ss:$16 sm:%s335]
  %vm337 = vcmask 1045508
  %v338 = vsel %vm337, %v336, %v333
  %s339 = scalar_lea.vmem %s0, 1
  %s340 = smov 192
  %v341 = vld [vmem:[%s339] ss:$16 sm:%s340]
  %vm342 = vcmask 1047558
  %v343 = vsel %vm342, %v341, %v338
  %344 = vrot.lane.b32.xlu0 %v343, 8
  %v345 = vpop.permute.xlu0 %344
  %vm346 = vcmask 130112
  %347 = vst.msk [vmem:[%s1] sm:$0xff] %vm346, %v345

// kernel: unet_up_block_forward.1
$region0: #{unet_up_block_forward.1}
  #allocation0 [shape = 'u32[]', space=smem, size = 0x4, offset = 0x4, fixed_abs, tag = 'smem constant byte address 0x4 - core index']
  #allocation1 [shape = 'u32[72,128]{1,0:T(1,128)}', space=vmem, size = 0x9000, scoped, tag = 'internal scratch']
  #allocation2 [shape = 'f32[2,18,128]{2,1,0:T(8,128)}', space=vmem, size = 0x6000, scoped, tag = 'scratch operand']
  %s0 = inlined_call_operand.vmem [shape: bf16[2,8,64], index: 0, kind: input, shape index: {}]
  %s1 = inlined_call_operand.vmem [shape: bf16[64,256], index: 1, kind: input, shape index: {}]
  %s2 = inlined_call_operand.vmem [shape: bf16[3,128,128], index: 2, kind: input, shape index: {}]
  %s3 = inlined_call_operand.vmem [shape: f32[1,8], index: 3, kind: input, shape index: {}]
  %s4 = inlined_call_operand.vmem [shape: f32[1,8], index: 4, kind: input, shape index: {}]
  %s5 = inlined_call_operand.vmem [shape: bf16[3,128,128], index: 5, kind: input, shape index: {}]
  %s6 = inlined_call_operand.vmem [shape: f32[1,8], index: 6, kind: input, shape index: {}]
  %s7 = inlined_call_operand.vmem [shape: f32[1,8], index: 7, kind: input, shape index: {}]
  %s8 = inlined_call_operand.vmem [shape: f32[128,8], index: 8, kind: input, shape index: {}]
  %s9 = inlined_call_operand.vmem [shape: f32[8,128], index: 9, kind: input, shape index: {}]
  %s10 = inlined_call_operand.vmem [shape: f32[2,16,128], index: 10, kind: output, shape index: {}]
  %s11 = sld [smem:[#allocation0]]
  $region50: #{unet_up_block_forward.1} parent=0
    _
  %s13 = ssub.s32 1, %s11
  %s14 = scalar_select 0, %s13, %s11
  // Predicated region
  $region2: #{unet_up_block_forward.1} parent=0 // pred_check
    _
  $region3: #{unet_up_block_forward.1} parent=0 // pred_check_branch
    %16 = sbr.rel (0) target = $region5
  $region4: #{unet_up_block_forward.1} parent=0 // pred_region
    _
  $region5: #{unet_up_block_forward.1} parent=0 // pred_fallthru
    _
  // Predicated region
  $region6: #{unet_up_block_forward.1} parent=0 // pred_check
    _
  $region7: #{unet_up_block_forward.1} parent=0 // pred_check_branch
    %18 = sbr.rel (0) target = $region9
  $region8: #{unet_up_block_forward.1} parent=0 // pred_region
    _
  $region9: #{unet_up_block_forward.1} parent=0 // pred_fallthru
    _
  // Predicated region
  $region10: #{unet_up_block_forward.1} parent=0 // pred_check
    _
  $region11: #{unet_up_block_forward.1} parent=0 // pred_check_branch
    %20 = sbr.rel (0) target = $region13
  $region12: #{unet_up_block_forward.1} parent=0 // pred_region
    _
  $region13: #{unet_up_block_forward.1} parent=0 // pred_fallthru
    _
  // Predicated region
  $region14: #{unet_up_block_forward.1} parent=0 // pred_check
    _
  $region15: #{unet_up_block_forward.1} parent=0 // pred_check_branch
    %22 = sbr.rel (0) target = $region17
  $region16: #{unet_up_block_forward.1} parent=0 // pred_region
    _
  $region17: #{unet_up_block_forward.1} parent=0 // pred_fallthru
    _
  // Predicated region
  $region18: #{unet_up_block_forward.1} parent=0 // pred_check
    _
  $region19: #{unet_up_block_forward.1} parent=0 // pred_check_branch
    %24 = sbr.rel (0) target = $region21
  $region20: #{unet_up_block_forward.1} parent=0 // pred_region
    _
  $region21: #{unet_up_block_forward.1} parent=0 // pred_fallthru
    _
  // Predicated region
  $region22: #{unet_up_block_forward.1} parent=0 // pred_check
    _
  $region23: #{unet_up_block_forward.1} parent=0 // pred_check_branch
    %26 = sbr.rel (0) target = $region25
  $region24: #{unet_up_block_forward.1} parent=0 // pred_region
    _
  $region25: #{unet_up_block_forward.1} parent=0 // pred_fallthru
    _
  // Predicated region
  $region26: #{unet_up_block_forward.1} parent=0 // pred_check
    _
  $region27: #{unet_up_block_forward.1} parent=0 // pred_check_branch
    %28 = sbr.rel (0) target = $region29
  $region28: #{unet_up_block_forward.1} parent=0 // pred_region
    _
  $region29: #{unet_up_block_forward.1} parent=0 // pred_fallthru
    _
  // Predicated region
  $region30: #{unet_up_block_forward.1} parent=0 // pred_check
    _
  $region31: #{unet_up_block_forward.1} parent=0 // pred_check_branch
    %30 = sbr.rel (0) target = $region33
  $region32: #{unet_up_block_forward.1} parent=0 // pred_region
    _
  $region33: #{unet_up_block_forward.1} parent=0 // pred_fallthru
    _
  // Predicated region
  $region34: #{unet_up_block_forward.1} parent=0 // pred_check
    _
  $region35: #{unet_up_block_forward.1} parent=0 // pred_check_branch
    %32 = sbr.rel (0) target = $region37
  $region36: #{unet_up_block_forward.1} parent=0 // pred_region
    _
  $region37: #{unet_up_block_forward.1} parent=0 // pred_fallthru
    _
  // Predicated region
  $region38: #{unet_up_block_forward.1} parent=0 // pred_check
    _
  $region39: #{unet_up_block_forward.1} parent=0 // pred_check_branch
    %34 = sbr.rel (0) target = $region41
  $region40: #{unet_up_block_forward.1} parent=0 // pred_region
    _
  $region41: #{unet_up_block_forward.1} parent=0 // pred_fallthru
    _
  %36 = vst [vmem:[#allocation2] sm:$0x1] 0.0
  %37 = vst [vmem:[#allocation2 + $0x18] sm:$0x1] 0.0
  %38 = vst [vmem:[#allocation2 + $0x11] sm:$0x1] 0.0
  %39 = vst [vmem:[#allocation2 + $0x29] sm:$0x1] 0.0
  %v40 = vld [vmem:[%s0] sm:$0xf]
  %v41 = vld [vmem:[%s0 + $0x4] sm:$0xf]
  %v42 = vld [vmem:[%s1] sm:$0xff]
  %v43 = vld [vmem:[%s1 + $0x8] sm:$0xff]
  %v44 = vld [vmem:[%s1 + $0x10] sm:$0xff]
  %v45 = vld [vmem:[%s1 + $0x18] sm:$0xff]
  %v46 = vld [vmem:[%s1 + $0x20] sm:$0xff]
  %v47 = vld [vmem:[%s1 + $0x28] sm:$0xff]
  %v48 = vld [vmem:[%s1 + $0x30] sm:$0xff]
  %v49 = vld [vmem:[%s1 + $0x38] sm:$0xff]
  %v52 = vunpack.c.l.b16 %v40
  %v53 = vunpack.c.l.b16 %v41
  %v54 = vpack.c.b16 %v53, %v52
  %v63 = vunpack.c.l.b16 %v42
  %v64 = vunpack.c.h.b16 %v42
  %v65 = vunpack.c.l.b16 %v43
  %v66 = vunpack.c.h.b16 %v43
  %v67 = vunpack.c.l.b16 %v44
  %v68 = vunpack.c.h.b16 %v44
  %v69 = vunpack.c.l.b16 %v45
  %v70 = vunpack.c.h.b16 %v45
  %v71 = vunpack.c.l.b16 %v46
  %v72 = vunpack.c.h.b16 %v46
  %v73 = vunpack.c.l.b16 %v47
  %v74 = vunpack.c.h.b16 %v47
  %v75 = vunpack.c.l.b16 %v48
  %v76 = vunpack.c.h.b16 %v48
  %v77 = vunpack.c.l.b16 %v49
  %v78 = vunpack.c.h.b16 %v49
  %v79 = vpack.c.b16 %v65, %v63
  %v80 = vpack.c.b16 %v66, %v64
  %v81 = vpack.c.b16 %v69, %v67
  %v82 = vpack.c.b16 %v70, %v68
  %v83 = vpack.c.b16 %v73, %v71
  %v84 = vpack.c.b16 %v74, %v72
  %v85 = vpack.c.b16 %v77, %v75
  %v86 = vpack.c.b16 %v78, %v76
  %vm95 = vcmask 523264
  %v97 = vsel %vm95, %v54, 0
  %99 = vmatpush.bf16.msra.mxu0 0
  %100 = vmatpush.bf16.msra.mxu0 0
  %101 = vmatpush.bf16.msra.mxu0 0
  %102 = vmatpush.bf16.msra.mxu0 0
  %103 = vmatpush.bf16.msra.mxu0 %v85
  %104 = vmatpush.bf16.msra.mxu0 %v83
  %105 = vmatpush.bf16.msra.mxu0 %v81
  %106 = vmatpush.bf16.msra.mxu0 %v79
  %107 = vmatmul.bf16.gmra.mxu0 %v97
  %v108 = vpop.f32.mrf.mxu0
  %v109 = vadd.f32 0.0, %v108
  %v110 = vpop.f32.mrf.mxu0
  %v111 = vadd.f32 0.0, %v110
  %112 = vdwg.mxu0
  %113 = vmatpush.bf16.msra.mxu0 0
  %114 = vmatpush.bf16.msra.mxu0 0
  %115 = vmatpush.bf16.msra.mxu0 0
  %116 = vmatpush.bf16.msra.mxu0 0
  %117 = vmatpush.bf16.msra.mxu0 %v86
  %118 = vmatpush.bf16.msra.mxu0 %v84
  %119 = vmatpush.bf16.msra.mxu0 %v82
  %120 = vmatpush.bf16.msra.mxu0 %v80
  %121 = vmatmul.bf16.gmra.mxu0 %v97
  %v122 = vpop.f32.mrf.mxu0
  %v123 = vadd.f32 0.0, %v122
  %v124 = vpop.f32.mrf.mxu0
  %v125 = vadd.f32 0.0, %v124
  %126 = vdwg.mxu0
  %v129 = vrot.slane %v109, 1
  %v130 = vrot.slane %v109, 2
  %v131 = vrot.slane %v109, 3
  %v132 = vrot.slane %v109, 4
  %v133 = vrot.slane %v109, 5
  %v134 = vrot.slane %v109, 6
  %v135 = vrot.slane %v109, 7
  %v136 = vrot.slane %v111, 1
  %v137 = vrot.slane %v111, 2
  %v138 = vrot.slane %v111, 3
  %v139 = vrot.slane %v111, 4
  %v140 = vrot.slane %v111, 5
  %v141 = vrot.slane %v111, 6
  %v142 = vrot.slane %v111, 7
  %v159 = vrot.slane %v123, 1
  %v160 = vrot.slane %v123, 2
  %v161 = vrot.slane %v123, 3
  %v162 = vrot.slane %v123, 4
  %v163 = vrot.slane %v123, 5
  %v164 = vrot.slane %v123, 6
  %v165 = vrot.slane %v123, 7
  %v166 = vrot.slane %v125, 1
  %v167 = vrot.slane %v125, 2
  %v168 = vrot.slane %v125, 3
  %v169 = vrot.slane %v125, 4
  %v170 = vrot.slane %v125, 5
  %v171 = vrot.slane %v125, 6
  %v172 = vrot.slane %v125, 7
  %v173 = vperm.slane %v123, 0
  %v174 = vperm.slane %v159, 0
  %v175 = vperm.slane %v160, 0
  %v176 = vperm.slane %v161, 0
  %v177 = vperm.slane %v162, 0
  %v178 = vperm.slane %v163, 0
  %v179 = vperm.slane %v164, 0
  %v180 = vperm.slane %v165, 0
  %v181 = vperm.slane %v125, 0
  %v182 = vperm.slane %v166, 0
  %v183 = vperm.slane %v167, 0
  %v184 = vperm.slane %v168, 0
  %v185 = vperm.slane %v169, 0
  %v186 = vperm.slane %v170, 0
  %v187 = vperm.slane %v171, 0
  %v188 = vperm.slane %v172, 0
  %vm205 = vcmask 1040384
  %v206 = vsel %vm205, %v109, %v173
  %v207 = vsel %vm205, %v129, %v174
  %v208 = vsel %vm205, %v130, %v175
  %v209 = vsel %vm205, %v131, %v176
  %v210 = vsel %vm205, %v132, %v177
  %v211 = vsel %vm205, %v133, %v178
  %v212 = vsel %vm205, %v134, %v179
  %v213 = vsel %vm205, %v135, %v180
  %v214 = vsel %vm205, %v111, %v181
  %v215 = vsel %vm205, %v136, %v182
  %v216 = vsel %vm205, %v137, %v183
  %v217 = vsel %vm205, %v138, %v184
  %v218 = vsel %vm205, %v139, %v185
  %v219 = vsel %vm205, %v140, %v186
  %v220 = vsel %vm205, %v141, %v187
  %v221 = vsel %vm205, %v142, %v188
  %238 = vst [vmem:[#allocation1] ss:$4 sm:$0xff] %v206
  %s239 = scalar_lea.vmem [#allocation1], 1
  %240 = vst [vmem:[%s239] ss:$4 sm:$0xff] %v207
  %s241 = scalar_lea.vmem [#allocation1], 2
  %242 = vst [vmem:[%s241] ss:$4 sm:$0xff] %v208
  %s243 = scalar_lea.vmem [#allocation1], 3
  %244 = vst [vmem:[%s243] ss:$4 sm:$0xff] %v209
  %s245 = scalar_lea.vmem [#allocation1], 32
  %246 = vst [vmem:[%s245] ss:$4 sm:$0xff] %v210
  %s247 = scalar_lea.vmem [#allocation1], 33
  %248 = vst [vmem:[%s247] ss:$4 sm:$0xff] %v211
  %s249 = scalar_lea.vmem [#allocation1], 34
  %250 = vst [vmem:[%s249] ss:$4 sm:$0xff] %v212
  %s251 = scalar_lea.vmem [#allocation1], 35
  %252 = vst [vmem:[%s251] ss:$4 sm:$0xff] %v213
  %v253 = vld.sshfl [vmem:[#allocation1] sm:$0xff pattern:$0x73625140]
  %v254 = vld.sshfl [vmem:[#allocation1 + $0x20] sm:$0xff pattern:$0x73625140]
  %255 = vst [vmem:[#allocation1] ss:$4 sm:$0xff] %v214
  %256 = vst [vmem:[%s239] ss:$4 sm:$0xff] %v215
  %257 = vst [vmem:[%s241] ss:$4 sm:$0xff] %v216
  %258 = vst [vmem:[%s243] ss:$4 sm:$0xff] %v217
  %259 = vst [vmem:[%s245] ss:$4 sm:$0xff] %v218
  %260 = vst [vmem:[%s247] ss:$4 sm:$0xff] %v219
  %261 = vst [vmem:[%s249] ss:$4 sm:$0xff] %v220
  %262 = vst [vmem:[%s251] ss:$4 sm:$0xff] %v221
  %v263 = vld.sshfl [vmem:[#allocation1] sm:$0xff pattern:$0x73625140]
  %v264 = vld.sshfl [vmem:[#allocation1 + $0x20] sm:$0xff pattern:$0x73625140]
  %269 = vst [vmem:[#allocation2 + $0x1] sm:$0xff] %v253
  %270 = vst [vmem:[#allocation2 + $0x9] sm:$0xff] %v254
  %271 = vst [vmem:[#allocation2 + $0x19] sm:$0xff] %v263
  %272 = vst [vmem:[#allocation2 + $0x21] sm:$0xff] %v264
  %v273 = vld [vmem:[#allocation2] sm:$0xff]
  %v274 = vld [vmem:[#allocation2 + $0x8] sm:$0xff]
  %v275 = vld [vmem:[#allocation2 + $0x18] sm:$0xff]
  %v276 = vld [vmem:[#allocation2 + $0x20] sm:$0xff]
  %v277 = vpack.c.bf16 %v274, %v273
  %v278 = vpack.c.bf16 %v276, %v275
  %v279 = vld [vmem:[%s2] sm:$0xf]
  %v280 = vld [vmem:[%s2 + $0x4] sm:$0xf]
  %v281 = vld [vmem:[%s2 + $0x8] sm:$0xf]
  %v282 = vld [vmem:[%s2 + $0xc] sm:$0xf]
  %v283 = vld [vmem:[%s2 + $0x10] sm:$0xf]
  %v284 = vld [vmem:[%s2 + $0x14] sm:$0xf]
  %v285 = vld [vmem:[%s2 + $0x18] sm:$0xf]
  %v286 = vld [vmem:[%s2 + $0x1c] sm:$0xf]
  %v287 = vld [vmem:[%s2 + $0x20] sm:$0xf]
  %v288 = vld [vmem:[%s2 + $0x24] sm:$0xf]
  %v289 = vld [vmem:[%s2 + $0x28] sm:$0xf]
  %v290 = vld [vmem:[%s2 + $0x2c] sm:$0xf]
  %v291 = vld [vmem:[%s2 + $0x30] sm:$0xf]
  %v292 = vld [vmem:[%s2 + $0x34] sm:$0xf]
  %v293 = vld [vmem:[%s2 + $0x38] sm:$0xf]
  %v294 = vld [vmem:[%s2 + $0x3c] sm:$0xf]
  %v295 = vld [vmem:[#allocation2 + $0x1] sm:$0xff]
  %v296 = vld [vmem:[#allocation2 + $0x9] sm:$0xff]
  %v297 = vld [vmem:[#allocation2 + $0x19] sm:$0xff]
  %v298 = vld [vmem:[#allocation2 + $0x21] sm:$0xff]
  %v299 = vpack.c.bf16 %v296, %v295
  %v300 = vpack.c.bf16 %v298, %v297
  %s301 = scalar_lea.vmem %s2, 64
  %v302 = vld [vmem:[%s301] sm:$0xf]
  %v303 = vld [vmem:[%s301 + $0x4] sm:$0xf]
  %v304 = vld [vmem:[%s301 + $0x8] sm:$0xf]
  %v305 = vld [vmem:[%s301 + $0xc] sm:$0xf]
  %v306 = vld [vmem:[%s301 + $0x10] sm:$0xf]
  %v307 = vld [vmem:[%s301 + $0x14] sm:$0xf]
  %v308 = vld [vmem:[%s301 + $0x18] sm:$0xf]
  %v309 = vld [vmem:[%s301 + $0x1c] sm:$0xf]
  %v310 = vld [vmem:[%s301 + $0x20] sm:$0xf]
  %v311 = vld [vmem:[%s301 + $0x24] sm:$0xf]
  %v312 = vld [vmem:[%s301 + $0x28] sm:$0xf]
  %v313 = vld [vmem:[%s301 + $0x2c] sm:$0xf]
  %v314 = vld [vmem:[%s301 + $0x30] sm:$0xf]
  %v315 = vld [vmem:[%s301 + $0x34] sm:$0xf]
  %v316 = vld [vmem:[%s301 + $0x38] sm:$0xf]
  %v317 = vld [vmem:[%s301 + $0x3c] sm:$0xf]
  %v334 = vunpack.c.l.b16 %v302
  %v335 = vunpack.c.l.b16 %v303
  %v336 = vunpack.c.l.b16 %v304
  %v337 = vunpack.c.l.b16 %v305
  %v338 = vunpack.c.l.b16 %v306
  %v339 = vunpack.c.l.b16 %v307
  %v340 = vunpack.c.l.b16 %v308
  %v341 = vunpack.c.l.b16 %v309
  %v342 = vunpack.c.l.b16 %v310
  %v343 = vunpack.c.l.b16 %v311
  %v344 = vunpack.c.l.b16 %v312
  %v345 = vunpack.c.l.b16 %v313
  %v346 = vunpack.c.l.b16 %v314
  %v347 = vunpack.c.l.b16 %v315
  %v348 = vunpack.c.l.b16 %v316
  %v349 = vunpack.c.l.b16 %v317
  %v350 = vpack.c.b16 %v335, %v334
  %v351 = vpack.c.b16 %v337, %v336
  %v352 = vpack.c.b16 %v339, %v338
  %v353 = vpack.c.b16 %v341, %v340
  %v354 = vpack.c.b16 %v343, %v342
  %v355 = vpack.c.b16 %v345, %v344
  %v356 = vpack.c.b16 %v347, %v346
  %v357 = vpack.c.b16 %v349, %v348
  %366 = vmatpush.bf16.msra.mxu0 %v357
  %367 = vmatpush.bf16.msra.mxu0 %v356
  %368 = vmatpush.bf16.msra.mxu0 %v355
  %369 = vmatpush.bf16.msra.mxu0 %v354
  %370 = vmatpush.bf16.msra.mxu0 %v353
  %371 = vmatpush.bf16.msra.mxu0 %v352
  %372 = vmatpush.bf16.msra.mxu0 %v351
  %373 = vmatpush.bf16.msra.mxu0 %v350
  %374 = vmatmul.bf16.gmra.mxu0 %v299
  %v375 = vpop.f32.mrf.mxu0
  %v376 = vadd.f32 0.0, %v375
  %v377 = vpop.f32.mrf.mxu0
  %v378 = vadd.f32 0.0, %v377
  %379 = vmatmul.bf16.gmra.mxu0 %v300
  %v380 = vpop.f32.mrf.mxu0
  %v381 = vadd.f32 0.0, %v380
  %v382 = vpop.f32.mrf.mxu0
  %v383 = vadd.f32 0.0, %v382
  %384 = vdwg.mxu0
  %v401 = vunpack.c.l.b16 %v279
  %v402 = vunpack.c.l.b16 %v280
  %v403 = vunpack.c.l.b16 %v281
  %v404 = vunpack.c.l.b16 %v282
  %v405 = vunpack.c.l.b16 %v283
  %v406 = vunpack.c.l.b16 %v284
  %v407 = vunpack.c.l.b16 %v285
  %v408 = vunpack.c.l.b16 %v286
  %v409 = vunpack.c.l.b16 %v287
  %v410 = vunpack.c.l.b16 %v288
  %v411 = vunpack.c.l.b16 %v289
  %v412 = vunpack.c.l.b16 %v290
  %v413 = vunpack.c.l.b16 %v291
  %v414 = vunpack.c.l.b16 %v292
  %v415 = vunpack.c.l.b16 %v293
  %v416 = vunpack.c.l.b16 %v294
  %v417 = vpack.c.b16 %v402, %v401
  %v418 = vpack.c.b16 %v404, %v403
  %v419 = vpack.c.b16 %v406, %v405
  %v420 = vpack.c.b16 %v408, %v407
  %v421 = vpack.c.b16 %v410, %v409
  %v422 = vpack.c.b16 %v412, %v411
  %v423 = vpack.c.b16 %v414, %v413
  %v424 = vpack.c.b16 %v416, %v415
  %433 = vmatpush.bf16.msra.mxu0 %v424
  %434 = vmatpush.bf16.msra.mxu0 %v423
  %435 = vmatpush.bf16.msra.mxu0 %v422
  %436 = vmatpush.bf16.msra.mxu0 %v421
  %437 = vmatpush.bf16.msra.mxu0 %v420
  %438 = vmatpush.bf16.msra.mxu0 %v419
  %439 = vmatpush.bf16.msra.mxu0 %v418
  %440 = vmatpush.bf16.msra.mxu0 %v417
  %441 = vmatmul.bf16.gmra.mxu0 %v277
  %v442 = vpop.f32.mrf.mxu0
  %v443 = vadd.f32 %v376, %v442
  %v444 = vpop.f32.mrf.mxu0
  %v445 = vadd.f32 %v378, %v444
  %446 = vmatmul.bf16.gmra.mxu0 %v278
  %v447 = vpop.f32.mrf.mxu0
  %v448 = vadd.f32 %v381, %v447
  %v449 = vpop.f32.mrf.mxu0
  %v450 = vadd.f32 %v383, %v449
  %451 = vdwg.mxu0
  %v452 = vld [vmem:[#allocation2 + $0x2] sm:$0xff]
  %v453 = vld [vmem:[#allocation2 + $0xa] sm:$0xff]
  %v454 = vld [vmem:[#allocation2 + $0x1a] sm:$0xff]
  %v455 = vld [vmem:[#allocation2 + $0x22] sm:$0xff]
  %v456 = vpack.c.bf16 %v453, %v452
  %v457 = vpack.c.bf16 %v455, %v454
  %s458 = scalar_lea.vmem %s2, 128
  %v459 = vld [vmem:[%s458] sm:$0xf]
  %v460 = vld [vmem:[%s458 + $0x4] sm:$0xf]
  %v461 = vld [vmem:[%s458 + $0x8] sm:$0xf]
  %v462 = vld [vmem:[%s458 + $0xc] sm:$0xf]
  %v463 = vld [vmem:[%s458 + $0x10] sm:$0xf]
  %v464 = vld [vmem:[%s458 + $0x14] sm:$0xf]
  %v465 = vld [vmem:[%s458 + $0x18] sm:$0xf]
  %v466 = vld [vmem:[%s458 + $0x1c] sm:$0xf]
  %v467 = vld [vmem:[%s458 + $0x20] sm:$0xf]
  %v468 = vld [vmem:[%s458 + $0x24] sm:$0xf]
  %v469 = vld [vmem:[%s458 + $0x28] sm:$0xf]
  %v470 = vld [vmem:[%s458 + $0x2c] sm:$0xf]
  %v471 = vld [vmem:[%s458 + $0x30] sm:$0xf]
  %v472 = vld [vmem:[%s458 + $0x34] sm:$0xf]
  %v473 = vld [vmem:[%s458 + $0x38] sm:$0xf]
  %v474 = vld [vmem:[%s458 + $0x3c] sm:$0xf]
  %v491 = vunpack.c.l.b16 %v459
  %v492 = vunpack.c.l.b16 %v460
  %v493 = vunpack.c.l.b16 %v461
  %v494 = vunpack.c.l.b16 %v462
  %v495 = vunpack.c.l.b16 %v463
  %v496 = vunpack.c.l.b16 %v464
  %v497 = vunpack.c.l.b16 %v465
  %v498 = vunpack.c.l.b16 %v466
  %v499 = vunpack.c.l.b16 %v467
  %v500 = vunpack.c.l.b16 %v468
  %v501 = vunpack.c.l.b16 %v469
  %v502 = vunpack.c.l.b16 %v470
  %v503 = vunpack.c.l.b16 %v471
  %v504 = vunpack.c.l.b16 %v472
  %v505 = vunpack.c.l.b16 %v473
  %v506 = vunpack.c.l.b16 %v474
  %v507 = vpack.c.b16 %v492, %v491
  %v508 = vpack.c.b16 %v494, %v493
  %v509 = vpack.c.b16 %v496, %v495
  %v510 = vpack.c.b16 %v498, %v497
  %v511 = vpack.c.b16 %v500, %v499
  %v512 = vpack.c.b16 %v502, %v501
  %v513 = vpack.c.b16 %v504, %v503
  %v514 = vpack.c.b16 %v506, %v505
  %523 = vmatpush.bf16.msra.mxu0 %v514
  %524 = vmatpush.bf16.msra.mxu0 %v513
  %525 = vmatpush.bf16.msra.mxu0 %v512
  %526 = vmatpush.bf16.msra.mxu0 %v511
  %527 = vmatpush.bf16.msra.mxu0 %v510
  %528 = vmatpush.bf16.msra.mxu0 %v509
  %529 = vmatpush.bf16.msra.mxu0 %v508
  %530 = vmatpush.bf16.msra.mxu0 %v507
  %531 = vmatmul.bf16.gmra.mxu0 %v456
  %v532 = vpop.f32.mrf.mxu0
  %v533 = vadd.f32 0.0, %v532
  %v534 = vpop.f32.mrf.mxu0
  %v535 = vadd.f32 0.0, %v534
  %536 = vmatmul.bf16.gmra.mxu0 %v457
  %v537 = vpop.f32.mrf.mxu0
  %v538 = vadd.f32 0.0, %v537
  %v539 = vpop.f32.mrf.mxu0
  %v540 = vadd.f32 0.0, %v539
  %541 = vdwg.mxu0
  %v542 = vadd.f32 %v443, %v533
  %v543 = vadd.f32 %v445, %v535
  %v544 = vadd.f32 %v448, %v538
  %v545 = vadd.f32 %v450, %v540
  %v546 = vadd.f32 %v542, %v543
  %v547 = vrot.slane %v546, 4
  %v548 = vadd.f32 %v546, %v547
  %v549 = vrot.slane %v548, 2
  %v550 = vadd.f32 %v548, %v549
  %v551 = vrot.slane %v550, 1
  %v552 = vadd.f32 %v550, %v551
  %v553 = vadd.f32 %v544, %v545
  %v554 = vrot.slane %v553, 4
  %v555 = vadd.f32 %v553, %v554
  %v556 = vrot.slane %v555, 2
  %v557 = vadd.f32 %v555, %v556
  %v558 = vrot.slane %v557, 1
  %v559 = vadd.f32 %v557, %v558
  %v560 = vmul.f32 %v542, %v542
  %v561 = vmul.f32 %v543, %v543
  %v562 = vmul.f32 %v544, %v544
  %v563 = vmul.f32 %v545, %v545
  %v564 = vadd.f32 %v560, %v561
  %v565 = vrot.slane %v564, 4
  %v566 = vadd.f32 %v564, %v565
  %v567 = vrot.slane %v566, 2
  %v568 = vadd.f32 %v566, %v567
  %v569 = vrot.slane %v568, 1
  %v570 = vadd.f32 %v568, %v569
  %v571 = vadd.f32 %v562, %v563
  %v572 = vrot.slane %v571, 4
  %v573 = vadd.f32 %v571, %v572
  %v574 = vrot.slane %v573, 2
  %v575 = vadd.f32 %v573, %v574
  %v576 = vrot.slane %v575, 1
  %v577 = vadd.f32 %v575, %v576
  %vm580 = vcmask 1041409
  %v581 = vsel %vm580, %v559, %v552
  %vm585 = vcmask 1043459
  %v586 = vsel %vm585, %v577, %v570
  %vm588 = vcmask 1041408
  %v589 = vsel %vm588, %v581, %v586
  %v590 = vld [vmem:[%s8] sm:$0xff]
  %v591 = vld [vmem:[%s8 + $0x8] sm:$0xff]
  %v592 = vld [vmem:[%s8 + $0x10] sm:$0xff]
  %v593 = vld [vmem:[%s8 + $0x18] sm:$0xff]
  %v594 = vld [vmem:[%s8 + $0x20] sm:$0xff]
  %v595 = vld [vmem:[%s8 + $0x28] sm:$0xff]
  %v596 = vld [vmem:[%s8 + $0x30] sm:$0xff]
  %v597 = vld [vmem:[%s8 + $0x38] sm:$0xff]
  %v598 = vld [vmem:[%s8 + $0x40] sm:$0xff]
  %v599 = vld [vmem:[%s8 + $0x48] sm:$0xff]
  %v600 = vld [vmem:[%s8 + $0x50] sm:$0xff]
  %v601 = vld [vmem:[%s8 + $0x58] sm:$0xff]
  %v602 = vld [vmem:[%s8 + $0x60] sm:$0xff]
  %v603 = vld [vmem:[%s8 + $0x68] sm:$0xff]
  %v604 = vld [vmem:[%s8 + $0x70] sm:$0xff]
  %v605 = vld [vmem:[%s8 + $0x78] sm:$0xff]
  %606 = vmatpush.msra.mxu0 %v605
  %607 = vmatpush.msra.mxu0 %v604
  %608 = vmatpush.msra.mxu0 %v603
  %609 = vmatpush.msra.mxu0 %v602
  %610 = vmatpush.msra.mxu0 %v601
  %611 = vmatpush.msra.mxu0 %v600
  %612 = vmatpush.msra.mxu0 %v599
  %613 = vmatpush.msra.mxu0 %v598
  %614 = vmatpush.msra.mxu0 %v597
  %615 = vmatpush.msra.mxu0 %v596
  %616 = vmatpush.msra.mxu0 %v595
  %617 = vmatpush.msra.mxu0 %v594
  %618 = vmatpush.msra.mxu0 %v593
  %619 = vmatpush.msra.mxu0 %v592
  %620 = vmatpush.msra.mxu0 %v591
  %621 = vmatpush.msra.mxu0 %v590
  %622 = vmatmul.f32.gmra.mxu0 %v589
  %v623 = vpop.f32.mrf.mxu0
  %v624 = vadd.f32 0.0, %v623
  %625 = vdwg.mxu0
  %v626 = vmul.f32 %v624, 0.00390625
  %v627 = vmul.f32 %v626, %v626
  %v629 = vrot.slane %v627, 6
  %v631 = vsub.f32 %v626, %v629
  %v632 = vadd.f32 %v631, 1e-05
  %v633 = vrsqrt.pop %v632
  %v634 = vmul.f32 %v633, %v632
  %v635 = vmul.f32 %v634, %v633
  %v636 = vmul.f32 0.5, %v635
  %v637 = vsub.f32 1.5, %v636
  %v638 = vmul.f32 %v633, %v637
  %vm639 = vweird.f32 %v632
  %vm640 = vweird.f32 %v633
  %vm641 = vmor %vm639, %vm640
  %v642 = vsel %vm641, %v633, %v638
  %v643 = vld [vmem:[%s3] sm:$0x1]
  %v645 = vperm.slane %v643, 0
  %v647 = vmul.f32 %v645, %v642
  %v648 = vld [vmem:[%s4] sm:$0x1]
  %v650 = vrot.slane %v647, 2
  %v652 = vmul.f32 %v626, %v650
  %v654 = vperm.slane %v648, 0
  %v656 = vsub.f32 %v654, %v652
  %v658 = vrot.slane %v656, 6
  %v660 = vsel %vm588, %v650, %v658
  %v661 = vld [vmem:[%s9] sm:$0xff]
  %vm662 = vcmask 64512
  %v664 = vsel %vm662, %v660, 0
  %666 = vmatpush.msra.mxu0 0.0
  %667 = vmatpush.msra.mxu0 0.0
  %668 = vmatpush.msra.mxu0 0.0
  %669 = vmatpush.msra.mxu0 0.0
  %670 = vmatpush.msra.mxu0 0.0
  %671 = vmatpush.msra.mxu0 0.0
  %672 = vmatpush.msra.mxu0 0.0
  %673 = vmatpush.msra.mxu0 0.0
  %674 = vmatpush.msra.mxu0 0.0
  %675 = vmatpush.msra.mxu0 0.0
  %676 = vmatpush.msra.mxu0 0.0
  %677 = vmatpush.msra.mxu0 0.0
  %678 = vmatpush.msra.mxu0 0.0
  %679 = vmatpush.msra.mxu0 0.0
  %680 = vmatpush.msra.mxu0 0.0
  %681 = vmatpush.msra.mxu0 %v661
  %682 = vmatmul.f32.gmra.mxu0 %v664
  %v683 = vpop.f32.mrf.mxu0
  %v684 = vadd.f32 0.0, %v683
  %685 = vdwg.mxu0
  %v687 = vrot.slane %v684, 1
  %v688 = vperm.slane %v684, 0
  %v689 = vperm.slane %v687, 0
  %v692 = vmul.f32 %v542, %v688
  %v693 = vmul.f32 %v543, %v688
  %v694 = vmul.f32 %v544, %v689
  %v695 = vmul.f32 %v545, %v689
  %696 = vst [vmem:[#allocation1] sm:$0xff] %v684
  %s697 = scalar_lea.vmem [#allocation1], 2
  %v698 = vld [vmem:[%s697] ss:$9 sm:$0xff]
  %s699 = scalar_lea.vmem [#allocation1], 3
  %v700 = vld [vmem:[%s699] ss:$9 sm:$0xff]
  %v701 = vperm.slane %v698, 0
  %v702 = vperm.slane %v700, 0
  %v705 = vadd.f32 %v692, %v701
  %v706 = vadd.f32 %v693, %v701
  %v707 = vadd.f32 %v694, %v702
  %v708 = vadd.f32 %v695, %v702
  %vm709 = vcmp.ge.f32.partialorder %v705, 0.0
  %vm710 = vcmp.ge.f32.partialorder %v706, 0.0
  %vm711 = vcmp.ge.f32.partialorder %v707, 0.0
  %vm712 = vcmp.ge.f32.partialorder %v708, 0.0
  %v713 = vmul.f32 %v705, 0.01
  %v714 = vmul.f32 %v706, 0.01
  %v715 = vmul.f32 %v707, 0.01
  %v716 = vmul.f32 %v708, 0.01
  %v717 = vsel %vm709, %v705, %v713
  %v718 = vsel %vm710, %v706, %v714
  %v719 = vsel %vm711, %v707, %v715
  %v720 = vsel %vm712, %v708, %v716
  %721 = vst [vmem:[#allocation2 + $0x1] sm:$0xff] %v717
  %722 = vst [vmem:[#allocation2 + $0x9] sm:$0xff] %v718
  %723 = vst [vmem:[#allocation2 + $0x19] sm:$0xff] %v719
  %724 = vst [vmem:[#allocation2 + $0x21] sm:$0xff] %v720
  %v725 = vld [vmem:[#allocation2] sm:$0xff]
  %v726 = vld [vmem:[#allocation2 + $0x8] sm:$0xff]
  %v727 = vld [vmem:[#allocation2 + $0x18] sm:$0xff]
  %v728 = vld [vmem:[#allocation2 + $0x20] sm:$0xff]
  %v729 = vpack.c.bf16 %v726, %v725
  %v730 = vpack.c.bf16 %v728, %v727
  %v731 = vld [vmem:[%s5] sm:$0xf]
  %v732 = vld [vmem:[%s5 + $0x4] sm:$0xf]
  %v733 = vld [vmem:[%s5 + $0x8] sm:$0xf]
  %v734 = vld [vmem:[%s5 + $0xc] sm:$0xf]
  %v735 = vld [vmem:[%s5 + $0x10] sm:$0xf]
  %v736 = vld [vmem:[%s5 + $0x14] sm:$0xf]
  %v737 = vld [vmem:[%s5 + $0x18] sm:$0xf]
  %v738 = vld [vmem:[%s5 + $0x1c] sm:$0xf]
  %v739 = vld [vmem:[%s5 + $0x20] sm:$0xf]
  %v740 = vld [vmem:[%s5 + $0x24] sm:$0xf]
  %v741 = vld [vmem:[%s5 + $0x28] sm:$0xf]
  %v742 = vld [vmem:[%s5 + $0x2c] sm:$0xf]
  %v743 = vld [vmem:[%s5 + $0x30] sm:$0xf]
  %v744 = vld [vmem:[%s5 + $0x34] sm:$0xf]
  %v745 = vld [vmem:[%s5 + $0x38] sm:$0xf]
  %v746 = vld [vmem:[%s5 + $0x3c] sm:$0xf]
  %v747 = vld [vmem:[#allocation2 + $0x1] sm:$0xff]
  %v748 = vld [vmem:[#allocation2 + $0x9] sm:$0xff]
  %v749 = vld [vmem:[#allocation2 + $0x19] sm:$0xff]
  %v750 = vld [vmem:[#allocation2 + $0x21] sm:$0xff]
  %v751 = vpack.c.bf16 %v748, %v747
  %v752 = vpack.c.bf16 %v750, %v749
  %s753 = scalar_lea.vmem %s5, 64
  %v754 = vld [vmem:[%s753] sm:$0xf]
  %v755 = vld [vmem:[%s753 + $0x4] sm:$0xf]
  %v756 = vld [vmem:[%s753 + $0x8] sm:$0xf]
  %v757 = vld [vmem:[%s753 + $0xc] sm:$0xf]
  %v758 = vld [vmem:[%s753 + $0x10] sm:$0xf]
  %v759 = vld [vmem:[%s753 + $0x14] sm:$0xf]
  %v760 = vld [vmem:[%s753 + $0x18] sm:$0xf]
  %v761 = vld [vmem:[%s753 + $0x1c] sm:$0xf]
  %v762 = vld [vmem:[%s753 + $0x20] sm:$0xf]
  %v763 = vld [vmem:[%s753 + $0x24] sm:$0xf]
  %v764 = vld [vmem:[%s753 + $0x28] sm:$0xf]
  %v765 = vld [vmem:[%s753 + $0x2c] sm:$0xf]
  %v766 = vld [vmem:[%s753 + $0x30] sm:$0xf]
  %v767 = vld [vmem:[%s753 + $0x34] sm:$0xf]
  %v768 = vld [vmem:[%s753 + $0x38] sm:$0xf]
  %v769 = vld [vmem:[%s753 + $0x3c] sm:$0xf]
  %v786 = vunpack.c.l.b16 %v754
  %v787 = vunpack.c.l.b16 %v755
  %v788 = vunpack.c.l.b16 %v756
  %v789 = vunpack.c.l.b16 %v757
  %v790 = vunpack.c.l.b16 %v758
  %v791 = vunpack.c.l.b16 %v759
  %v792 = vunpack.c.l.b16 %v760
  %v793 = vunpack.c.l.b16 %v761
  %v794 = vunpack.c.l.b16 %v762
  %v795 = vunpack.c.l.b16 %v763
  %v796 = vunpack.c.l.b16 %v764
  %v797 = vunpack.c.l.b16 %v765
  %v798 = vunpack.c.l.b16 %v766
  %v799 = vunpack.c.l.b16 %v767
  %v800 = vunpack.c.l.b16 %v768
  %v801 = vunpack.c.l.b16 %v769
  %v802 = vpack.c.b16 %v787, %v786
  %v803 = vpack.c.b16 %v789, %v788
  %v804 = vpack.c.b16 %v791, %v790
  %v805 = vpack.c.b16 %v793, %v792
  %v806 = vpack.c.b16 %v795, %v794
  %v807 = vpack.c.b16 %v797, %v796
  %v808 = vpack.c.b16 %v799, %v798
  %v809 = vpack.c.b16 %v801, %v800
  %818 = vmatpush.bf16.msra.mxu0 %v809
  %819 = vmatpush.bf16.msra.mxu0 %v808
  %820 = vmatpush.bf16.msra.mxu0 %v807
  %821 = vmatpush.bf16.msra.mxu0 %v806
  %822 = vmatpush.bf16.msra.mxu0 %v805
  %823 = vmatpush.bf16.msra.mxu0 %v804
  %824 = vmatpush.bf16.msra.mxu0 %v803
  %825 = vmatpush.bf16.msra.mxu0 %v802
  %826 = vmatmul.bf16.gmra.mxu0 %v751
  %v827 = vpop.f32.mrf.mxu0
  %v828 = vadd.f32 0.0, %v827
  %v829 = vpop.f32.mrf.mxu0
  %v830 = vadd.f32 0.0, %v829
  %831 = vmatmul.bf16.gmra.mxu0 %v752
  %v832 = vpop.f32.mrf.mxu0
  %v833 = vadd.f32 0.0, %v832
  %v834 = vpop.f32.mrf.mxu0
  %v835 = vadd.f32 0.0, %v834
  %836 = vdwg.mxu0
  %v853 = vunpack.c.l.b16 %v731
  %v854 = vunpack.c.l.b16 %v732
  %v855 = vunpack.c.l.b16 %v733
  %v856 = vunpack.c.l.b16 %v734
  %v857 = vunpack.c.l.b16 %v735
  %v858 = vunpack.c.l.b16 %v736
  %v859 = vunpack.c.l.b16 %v737
  %v860 = vunpack.c.l.b16 %v738
  %v861 = vunpack.c.l.b16 %v739
  %v862 = vunpack.c.l.b16 %v740
  %v863 = vunpack.c.l.b16 %v741
  %v864 = vunpack.c.l.b16 %v742
  %v865 = vunpack.c.l.b16 %v743
  %v866 = vunpack.c.l.b16 %v744
  %v867 = vunpack.c.l.b16 %v745
  %v868 = vunpack.c.l.b16 %v746
  %v869 = vpack.c.b16 %v854, %v853
  %v870 = vpack.c.b16 %v856, %v855
  %v871 = vpack.c.b16 %v858, %v857
  %v872 = vpack.c.b16 %v860, %v859
  %v873 = vpack.c.b16 %v862, %v861
  %v874 = vpack.c.b16 %v864, %v863
  %v875 = vpack.c.b16 %v866, %v865
  %v876 = vpack.c.b16 %v868, %v867
  %885 = vmatpush.bf16.msra.mxu0 %v876
  %886 = vmatpush.bf16.msra.mxu0 %v875
  %887 = vmatpush.bf16.msra.mxu0 %v874
  %888 = vmatpush.bf16.msra.mxu0 %v873
  %889 = vmatpush.bf16.msra.mxu0 %v872
  %890 = vmatpush.bf16.msra.mxu0 %v871
  %891 = vmatpush.bf16.msra.mxu0 %v870
  %892 = vmatpush.bf16.msra.mxu0 %v869
  %893 = vmatmul.bf16.gmra.mxu0 %v729
  %v894 = vpop.f32.mrf.mxu0
  %v895 = vadd.f32 %v828, %v894
  %v896 = vpop.f32.mrf.mxu0
  %v897 = vadd.f32 %v830, %v896
  %898 = vmatmul.bf16.gmra.mxu0 %v730
  %v899 = vpop.f32.mrf.mxu0
  %v900 = vadd.f32 %v833, %v899
  %v901 = vpop.f32.mrf.mxu0
  %v902 = vadd.f32 %v835, %v901
  %903 = vdwg.mxu0
  %v904 = vld [vmem:[#allocation2 + $0x2] sm:$0xff]
  %v905 = vld [vmem:[#allocation2 + $0xa] sm:$0xff]
  %v906 = vld [vmem:[#allocation2 + $0x1a] sm:$0xff]
  %v907 = vld [vmem:[#allocation2 + $0x22] sm:$0xff]
  %v908 = vpack.c.bf16 %v905, %v904
  %v909 = vpack.c.bf16 %v907, %v906
  %s910 = scalar_lea.vmem %s5, 128
  %v911 = vld [vmem:[%s910] sm:$0xf]
  %v912 = vld [vmem:[%s910 + $0x4] sm:$0xf]
  %v913 = vld [vmem:[%s910 + $0x8] sm:$0xf]
  %v914 = vld [vmem:[%s910 + $0xc] sm:$0xf]
  %v915 = vld [vmem:[%s910 + $0x10] sm:$0xf]
  %v916 = vld [vmem:[%s910 + $0x14] sm:$0xf]
  %v917 = vld [vmem:[%s910 + $0x18] sm:$0xf]
  %v918 = vld [vmem:[%s910 + $0x1c] sm:$0xf]
  %v919 = vld [vmem:[%s910 + $0x20] sm:$0xf]
  %v920 = vld [vmem:[%s910 + $0x24] sm:$0xf]
  %v921 = vld [vmem:[%s910 + $0x28] sm:$0xf]
  %v922 = vld [vmem:[%s910 + $0x2c] sm:$0xf]
  %v923 = vld [vmem:[%s910 + $0x30] sm:$0xf]
  %v924 = vld [vmem:[%s910 + $0x34] sm:$0xf]
  %v925 = vld [vmem:[%s910 + $0x38] sm:$0xf]
  %v926 = vld [vmem:[%s910 + $0x3c] sm:$0xf]
  %v943 = vunpack.c.l.b16 %v911
  %v944 = vunpack.c.l.b16 %v912
  %v945 = vunpack.c.l.b16 %v913
  %v946 = vunpack.c.l.b16 %v914
  %v947 = vunpack.c.l.b16 %v915
  %v948 = vunpack.c.l.b16 %v916
  %v949 = vunpack.c.l.b16 %v917
  %v950 = vunpack.c.l.b16 %v918
  %v951 = vunpack.c.l.b16 %v919
  %v952 = vunpack.c.l.b16 %v920
  %v953 = vunpack.c.l.b16 %v921
  %v954 = vunpack.c.l.b16 %v922
  %v955 = vunpack.c.l.b16 %v923
  %v956 = vunpack.c.l.b16 %v924
  %v957 = vunpack.c.l.b16 %v925
  %v958 = vunpack.c.l.b16 %v926
  %v959 = vpack.c.b16 %v944, %v943
  %v960 = vpack.c.b16 %v946, %v945
  %v961 = vpack.c.b16 %v948, %v947
  %v962 = vpack.c.b16 %v950, %v949
  %v963 = vpack.c.b16 %v952, %v951
  %v964 = vpack.c.b16 %v954, %v953
  %v965 = vpack.c.b16 %v956, %v955
  %v966 = vpack.c.b16 %v958, %v957
  %975 = vmatpush.bf16.msra.mxu0 %v966
  %976 = vmatpush.bf16.msra.mxu0 %v965
  %977 = vmatpush.bf16.msra.mxu0 %v964
  %978 = vmatpush.bf16.msra.mxu0 %v963
  %979 = vmatpush.bf16.msra.mxu0 %v962
  %980 = vmatpush.bf16.msra.mxu0 %v961
  %981 = vmatpush.bf16.msra.mxu0 %v960
  %982 = vmatpush.bf16.msra.mxu0 %v959
  %983 = vmatmul.bf16.gmra.mxu0 %v908
  %v984 = vpop.f32.mrf.mxu0
  %v985 = vadd.f32 0.0, %v984
  %v986 = vpop.f32.mrf.mxu0
  %v987 = vadd.f32 0.0, %v986
  %988 = vmatmul.bf16.gmra.mxu0 %v909
  %v989 = vpop.f32.mrf.mxu0
  %v990 = vadd.f32 0.0, %v989
  %v991 = vpop.f32.mrf.mxu0
  %v992 = vadd.f32 0.0, %v991
  %993 = vdwg.mxu0
  %v994 = vadd.f32 %v895, %v985
  %v995 = vadd.f32 %v897, %v987
  %v996 = vadd.f32 %v900, %v990
  %v997 = vadd.f32 %v902, %v992
  %v998 = vadd.f32 %v994, %v995
  %v999 = vrot.slane %v998, 4
  %v1000 = vadd.f32 %v998, %v999
  %v1001 = vrot.slane %v1000, 2
  %v1002 = vadd.f32 %v1000, %v1001
  %v1003 = vrot.slane %v1002, 1
  %v1004 = vadd.f32 %v1002, %v1003
  %v1005 = vadd.f32 %v996, %v997
  %v1006 = vrot.slane %v1005, 4
  %v1007 = vadd.f32 %v1005, %v1006
  %v1008 = vrot.slane %v1007, 2
  %v1009 = vadd.f32 %v1007, %v1008
  %v1010 = vrot.slane %v1009, 1
  %v1011 = vadd.f32 %v1009, %v1010
  %v1012 = vmul.f32 %v994, %v994
  %v1013 = vmul.f32 %v995, %v995
  %v1014 = vmul.f32 %v996, %v996
  %v1015 = vmul.f32 %v997, %v997
  %v1016 = vadd.f32 %v1012, %v1013
  %v1017 = vrot.slane %v1016, 4
  %v1018 = vadd.f32 %v1016, %v1017
  %v1019 = vrot.slane %v1018, 2
  %v1020 = vadd.f32 %v1018, %v1019
  %v1021 = vrot.slane %v1020, 1
  %v1022 = vadd.f32 %v1020, %v1021
  %v1023 = vadd.f32 %v1014, %v1015
  %v1024 = vrot.slane %v1023, 4
  %v1025 = vadd.f32 %v1023, %v1024
  %v1026 = vrot.slane %v1025, 2
  %v1027 = vadd.f32 %v1025, %v1026
  %v1028 = vrot.slane %v1027, 1
  %v1029 = vadd.f32 %v1027, %v1028
  %v1032 = vsel %vm580, %v1011, %v1004
  %v1036 = vsel %vm585, %v1029, %v1022
  %v1038 = vsel %vm588, %v1032, %v1036
  %v1039 = vld [vmem:[%s8] sm:$0xff]
  %v1040 = vld [vmem:[%s8 + $0x8] sm:$0xff]
  %v1041 = vld [vmem:[%s8 + $0x10] sm:$0xff]
  %v1042 = vld [vmem:[%s8 + $0x18] sm:$0xff]
  %v1043 = vld [vmem:[%s8 + $0x20] sm:$0xff]
  %v1044 = vld [vmem:[%s8 + $0x28] sm:$0xff]
  %v1045 = vld [vmem:[%s8 + $0x30] sm:$0xff]
  %v1046 = vld [vmem:[%s8 + $0x38] sm:$0xff]
  %v1047 = vld [vmem:[%s8 + $0x40] sm:$0xff]
  %v1048 = vld [vmem:[%s8 + $0x48] sm:$0xff]
  %v1049 = vld [vmem:[%s8 + $0x50] sm:$0xff]
  %v1050 = vld [vmem:[%s8 + $0x58] sm:$0xff]
  %v1051 = vld [vmem:[%s8 + $0x60] sm:$0xff]
  %v1052 = vld [vmem:[%s8 + $0x68] sm:$0xff]
  %v1053 = vld [vmem:[%s8 + $0x70] sm:$0xff]
  %v1054 = vld [vmem:[%s8 + $0x78] sm:$0xff]
  %1055 = vmatpush.msra.mxu0 %v1054
  %1056 = vmatpush.msra.mxu0 %v1053
  %1057 = vmatpush.msra.mxu0 %v1052
  %1058 = vmatpush.msra.mxu0 %v1051
  %1059 = vmatpush.msra.mxu0 %v1050
  %1060 = vmatpush.msra.mxu0 %v1049
  %1061 = vmatpush.msra.mxu0 %v1048
  %1062 = vmatpush.msra.mxu0 %v1047
  %1063 = vmatpush.msra.mxu0 %v1046
  %1064 = vmatpush.msra.mxu0 %v1045
  %1065 = vmatpush.msra.mxu0 %v1044
  %1066 = vmatpush.msra.mxu0 %v1043
  %1067 = vmatpush.msra.mxu0 %v1042
  %1068 = vmatpush.msra.mxu0 %v1041
  %1069 = vmatpush.msra.mxu0 %v1040
  %1070 = vmatpush.msra.mxu0 %v1039
  %1071 = vmatmul.f32.gmra.mxu0 %v1038
  %v1072 = vpop.f32.mrf.mxu0
  %v1073 = vadd.f32 0.0, %v1072
  %1074 = vdwg.mxu0
  %v1075 = vmul.f32 %v1073, 0.00390625
  %v1076 = vmul.f32 %v1075, %v1075
  %v1078 = vrot.slane %v1076, 6
  %v1080 = vsub.f32 %v1075, %v1078
  %v1081 = vadd.f32 %v1080, 1e-05
  %v1082 = vrsqrt.pop %v1081
  %v1083 = vmul.f32 %v1082, %v1081
  %v1084 = vmul.f32 %v1083, %v1082
  %v1085 = vmul.f32 0.5, %v1084
  %v1086 = vsub.f32 1.5, %v1085
  %v1087 = vmul.f32 %v1082, %v1086
  %vm1088 = vweird.f32 %v1081
  %vm1089 = vweird.f32 %v1082
  %vm1090 = vmor %vm1088, %vm1089
  %v1091 = vsel %vm1090, %v1082, %v1087
  %v1092 = vld [vmem:[%s6] sm:$0x1]
  %v1094 = vperm.slane %v1092, 0
  %v1096 = vmul.f32 %v1094, %v1091
  %v1097 = vld [vmem:[%s7] sm:$0x1]
  %v1099 = vrot.slane %v1096, 2
  %v1101 = vmul.f32 %v1075, %v1099
  %v1103 = vperm.slane %v1097, 0
  %v1105 = vsub.f32 %v1103, %v1101
  %v1107 = vrot.slane %v1105, 6
  %v1109 = vsel %vm588, %v1099, %v1107
  %v1110 = vld [vmem:[%s9] sm:$0xff]
  %v1112 = vsel %vm662, %v1109, 0
  %1114 = vmatpush.msra.mxu0 0.0
  %1115 = vmatpush.msra.mxu0 0.0
  %1116 = vmatpush.msra.mxu0 0.0
  %1117 = vmatpush.msra.mxu0 0.0
  %1118 = vmatpush.msra.mxu0 0.0
  %1119 = vmatpush.msra.mxu0 0.0
  %1120 = vmatpush.msra.mxu0 0.0
  %1121 = vmatpush.msra.mxu0 0.0
  %1122 = vmatpush.msra.mxu0 0.0
  %1123 = vmatpush.msra.mxu0 0.0
  %1124 = vmatpush.msra.mxu0 0.0
  %1125 = vmatpush.msra.mxu0 0.0
  %1126 = vmatpush.msra.mxu0 0.0
  %1127 = vmatpush.msra.mxu0 0.0
  %1128 = vmatpush.msra.mxu0 0.0
  %1129 = vmatpush.msra.mxu0 %v1110
  %1130 = vmatmul.f32.gmra.mxu0 %v1112
  %v1131 = vpop.f32.mrf.mxu0
  %v1132 = vadd.f32 0.0, %v1131
  %1133 = vdwg.mxu0
  %v1135 = vrot.slane %v1132, 1
  %v1136 = vperm.slane %v1132, 0
  %v1137 = vperm.slane %v1135, 0
  %v1140 = vmul.f32 %v994, %v1136
  %v1141 = vmul.f32 %v995, %v1136
  %v1142 = vmul.f32 %v996, %v1137
  %v1143 = vmul.f32 %v997, %v1137
  %1144 = vst [vmem:[#allocation1] sm:$0xff] %v1132
  %s1145 = scalar_lea.vmem [#allocation1], 2
  %v1146 = vld [vmem:[%s1145] ss:$9 sm:$0xff]
  %s1147 = scalar_lea.vmem [#allocation1], 3
  %v1148 = vld [vmem:[%s1147] ss:$9 sm:$0xff]
  %v1149 = vperm.slane %v1146, 0
  %v1150 = vperm.slane %v1148, 0
  %v1153 = vadd.f32 %v1140, %v1149
  %v1154 = vadd.f32 %v1141, %v1149
  %v1155 = vadd.f32 %v1142, %v1150
  %v1156 = vadd.f32 %v1143, %v1150
  %vm1157 = vcmp.ge.f32.partialorder %v1153, 0.0
  %vm1158 = vcmp.ge.f32.partialorder %v1154, 0.0
  %vm1159 = vcmp.ge.f32.partialorder %v1155, 0.0
  %vm1160 = vcmp.ge.f32.partialorder %v1156, 0.0
  %v1161 = vmul.f32 %v1153, 0.01
  %v1162 = vmul.f32 %v1154, 0.01
  %v1163 = vmul.f32 %v1155, 0.01
  %v1164 = vmul.f32 %v1156, 0.01
  %v1165 = vsel %vm1157, %v1153, %v1161
  %v1166 = vsel %vm1158, %v1154, %v1162
  %v1167 = vsel %vm1159, %v1155, %v1163
  %v1168 = vsel %vm1160, %v1156, %v1164
  %1169 = vst [vmem:[%s10] sm:$0xff] %v1165
  %1170 = vst [vmem:[%s10 + $0x8] sm:$0xff] %v1166
  %1171 = vst [vmem:[%s10 + $0x10] sm:$0xff] %v1167
  %1172 = vst [vmem:[%s10 + $0x18] sm:$0xff] %v1168
  // Predicated region
  $region42: #{unet_up_block_forward.1} parent=0 // pred_check
    _
  $region43: #{unet_up_block_forward.1} parent=0 // pred_check_branch
    %1174 = sbr.rel (0) target = $region45
  $region44: #{unet_up_block_forward.1} parent=0 // pred_region
    _
  $region45: #{unet_up_block_forward.1} parent=0 // pred_fallthru
    _
  // Predicated region
  $region46: #{unet_up_block_forward.1} parent=0 // pred_check
    _
  $region47: #{unet_up_block_forward.1} parent=0 // pred_check_branch
    %1176 = sbr.rel (0) target = $region49
  $region48: #{unet_up_block_forward.1} parent=0 // pred_region
    _
  $region49: #{unet_up_block_forward.1} parent=0 // pred_fallthru
    _

</llo_original>
